<compile_context>
chip_gen: v5e
topology: v5e:2x2
jax: 0.10.0
libtpu: 0.0.40
codegen_flags: <defaults>
</compile_context>

<pallas_src>
import jax
import jax.numpy as jnp
import numpy as np
from jax import lax
from jax.experimental import pallas as pl
from jax.experimental.pallas import tpu as pltpu


# --------------------------- fused Pallas kernel ------------------------------
def _make_kernel(cin, cout, k, wu, nu):
    p = k // 2

    def kernel(x_ref, u_ref, w_ref, b_ref, o_ref):
        x = x_ref[0]                                                   # (Cin, N)
        # nearest-neighbour upsample as a one-hot selection matmul (MXU)
        xup = jnp.dot(x, u_ref[...], preferred_element_type=jnp.float32)  # (Cin, Nu)

        # horizontal (X) position of every flattened upsampled pixel, for edge masks
        xpos = lax.broadcasted_iota(jnp.int32, (cin, nu), 1) % wu

        # Build the K*K shifted windows of the zero-padded upsampled image
        # entirely in registers/VMEM (no padded HBM copy, no in-kernel reshape).
        wins = []
        for dy in range(k):
            for dx in range(k):
                oy, ox = dy - p, dx - p
                s = oy * wu + ox                       # flattened source offset
                if s > 0:
                    win = jnp.concatenate(
                        [xup[:, s:], jnp.zeros((cin, s), jnp.float32)], axis=1)
                elif s < 0:
                    win = jnp.concatenate(
                        [jnp.zeros((cin, -s), jnp.float32), xup[:, :nu + s]], axis=1)
                else:
                    win = xup
                # zero columns whose horizontal source fell off the image
                # (vertical out-of-range already got zeros from the concat)
                if ox > 0:
                    win = jnp.where(xpos < wu - ox, win, 0.0)
                elif ox < 0:
                    win = jnp.where(xpos >= -ox, win, 0.0)
                wins.append(win)
        patches = jnp.concatenate(wins, axis=0)        # (K*K*Cin, Nu)

        out = jnp.dot(w_ref[...], patches,
                      preferred_element_type=jnp.float32)              # (Cout, Nu)
        out = out + b_ref[...]                                         # bias (Cout,1)
        o_ref[0] = out.astype(o_ref.dtype)

    return kernel


# --------------------------------- wrapper ------------------------------------
def interpolate_conv_upsample(x_nchw, weight, bias, *, factor=2, mode="nearest"):
    """Forward pass of InterpolateConvUpSampleLayer (4-D image path).

    x_nchw: (B, Cin, H, W); weight: (Cout, Cin, K, K) PyTorch layout; bias: (Cout,)
    returns: (B, Cout, H*factor, W*factor)
    """
    assert mode == "nearest", "only mode='nearest' is implemented"
    # TODO(synk): 5-D video path (ChannelChunkConv3d + chunked_interpolate /
    # temporal_upsample) not implemented; 4-D image path only.
    B, Cin, H, W = x_nchw.shape
    Cout, Cin2, K, K2 = weight.shape
    assert Cin2 == Cin and K == K2 and K % 2 == 1
    f = int(factor)
    Hu, Wu = H * f, W * f
    N, Nu = H * W, Hu * Wu

    # one-hot nearest-upsample matrix (N, Nu): column (Y*Wu+X) selects input
    # pixel (Y//f)*W + (X//f).  Built once outside the kernel; 0/1 entries.
    yy = jnp.arange(Nu, dtype=jnp.int32) // Wu
    xx = jnp.arange(Nu, dtype=jnp.int32) % Wu
    src = (yy // f) * W + (xx // f)
    u_mat = (jnp.arange(N, dtype=jnp.int32)[:, None] == src[None, :]).astype(jnp.float32)

    # (Cout, Cin, K, K) -> (Cout, K*K*Cin), matching the in-kernel tap stacking order
    w_flat = jnp.transpose(weight, (0, 2, 3, 1)).reshape(Cout, K * K * Cin)
    w_flat = w_flat.astype(jnp.float32)
    b_col = bias.reshape(Cout, 1).astype(jnp.float32)
    x_flat = x_nchw.reshape(B, Cin, N).astype(jnp.float32)   # free reshape of NCHW

    out = pl.pallas_call(
        _make_kernel(Cin, Cout, K, Wu, Nu),
        out_shape=jax.ShapeDtypeStruct((B, Cout, Nu), jnp.float32),
        grid=(B,),
        in_specs=[
            pl.BlockSpec((1, Cin, N), lambda i: (i, 0, 0)),
            pl.BlockSpec((N, Nu), lambda i: (0, 0)),           # resident across grid
            pl.BlockSpec((Cout, K * K * Cin), lambda i: (0, 0)),
            pl.BlockSpec((Cout, 1), lambda i: (0, 0)),
        ],
        out_specs=pl.BlockSpec((1, Cout, Nu), lambda i: (i, 0, 0)),
        compiler_params=pltpu.CompilerParams(dimension_semantics=("parallel",)),
    )(x_flat, u_mat, w_flat, b_col)

    return out.reshape(B, Cout, Hu, Wu)


# -------------------------- plain-JAX reference --------------------------------
def reference(x_nchw, weight, bias, factor):
    K = weight.shape[2]
    p = K // 2
    # PyTorch F.interpolate(mode='nearest') with integer factor == element repeat
    xup = jnp.repeat(jnp.repeat(x_nchw, factor, axis=2), factor, axis=3)
    out = lax.conv_general_dilated(
        xup.astype(jnp.float32), weight.astype(jnp.float32),
        window_strides=(1, 1), padding=((p, p), (p, p)),
        dimension_numbers=("NCHW", "OIHW", "NCHW"))
    return out + bias.reshape(1, -1, 1, 1).astype(jnp.float32)


# ----------------------------------- main ---------------------------------------
if __name__ == "__main__":
    B, C_IN, C_OUT, H, W = 2, 16, 32, 16, 16
    K, FACTOR = 3, 2

    key = jax.random.PRNGKey(0)
    kx, kw, kb = jax.random.split(key, 3)
    x = jax.random.normal(kx, (B, C_IN, H, W), jnp.float32)           # NCHW like PyTorch
    weight = jax.random.normal(kw, (C_OUT, C_IN, K, K), jnp.float32) * 0.1
    bias = jax.random.normal(kb, (C_OUT,), jnp.float32) * 0.1

    out = interpolate_conv_upsample(x, weight, bias, factor=FACTOR, mode="nearest")
    out = jax.block_until_ready(out)
    assert out.shape == (B, C_OUT, H * FACTOR, W * FACTOR) and out.dtype == jnp.float32

    ref = jax.block_until_ready(reference(x, weight, bias, FACTOR))
    np.testing.assert_allclose(np.asarray(out), np.asarray(ref), rtol=2e-2, atol=2e-2)

    print("KERNEL_OK")
</pallas_src>

<mosaic_0001>
module attributes {stable_mosaic.version = 11 : i64} {
  func.func @kernel(%arg0: i32, %arg1: memref<1x16x256xf32, #tpu.memory_space<vmem>>, %arg2: memref<256x1024xf32, #tpu.memory_space<vmem>>, %arg3: memref<32x144xf32, #tpu.memory_space<vmem>>, %arg4: memref<32x1xf32, #tpu.memory_space<vmem>>, %arg5: memref<1x32x1024xf32, #tpu.memory_space<vmem>>) attributes {dimension_semantics = [#tpu.dimension_semantics<parallel>], iteration_bounds = array<i64: 2>, scalar_prefetch = 0 : i64, scratch_operands = 0 : i64, tpu.core_type = #tpu.core_type<tc>, window_params = [{transform_indices = @transform_0, window_bounds = array<i64: 1, 16, 256>}, {pipeline_mode = #tpu.pipeline_mode<synchronous>, transform_indices = @transform_1, window_bounds = array<i64: 256, 1024>}, {pipeline_mode = #tpu.pipeline_mode<synchronous>, transform_indices = @transform_2, window_bounds = array<i64: 32, 144>}, {pipeline_mode = #tpu.pipeline_mode<synchronous>, transform_indices = @transform_3, window_bounds = array<i64: 32, 1>}, {transform_indices = @transform_4, window_bounds = array<i64: 1, 32, 1024>}]} {
    %c0 = arith.constant 0 : index
    %c0_0 = arith.constant 0 : index
    %c0_1 = arith.constant 0 : index
    %0 = vector.load %arg1[%c0, %c0_0, %c0_1] : memref<1x16x256xf32, #tpu.memory_space<vmem>>, vector<1x16x256xf32>
    %1 = vector.shape_cast %0 : vector<1x16x256xf32> to vector<16x256xf32>
    %c0_2 = arith.constant 0 : index
    %c0_3 = arith.constant 0 : index
    %2 = vector.load %arg2[%c0_2, %c0_3] : memref<256x1024xf32, #tpu.memory_space<vmem>>, vector<256x1024xf32>
    %cst = arith.constant dense<0.000000e+00> : vector<16x1024xf32>
    %3 = tpu.matmul %1, %2, %cst {dimension_numbers = #tpu.dot_dimension_numbers<[1], [0], [0], [1], [0, 0, 1, 1], [], []>} : vector<16x256xf32>, vector<256x1024xf32>, vector<16x1024xf32> -> vector<16x1024xf32>
    %4 = tpu.iota {dimensions = array<i32: 1>} : vector<16x1024xi32>
    %c32_i32 = arith.constant 32 : i32
    %c0_i32 = arith.constant 0 : i32
    %5 = arith.cmpi eq, %c32_i32, %c0_i32 : i32
    %c1_i32 = arith.constant 1 : i32
    %6 = arith.select %5, %c1_i32, %c32_i32 : i32
    %7 = vector.broadcast %6 : i32 to vector<16x1024xi32>
    %8 = arith.remsi %4, %7 : vector<16x1024xi32>
    %c0_i32_4 = arith.constant 0 : i32
    %9 = vector.broadcast %c0_i32_4 : i32 to vector<16x1024xi32>
    %10 = arith.cmpi ne, %8, %9 : vector<16x1024xi32>
    %c0_i32_5 = arith.constant 0 : i32
    %11 = vector.broadcast %c0_i32_5 : i32 to vector<16x1024xi32>
    %12 = arith.cmpi slt, %8, %11 : vector<16x1024xi32>
    %c0_i32_6 = arith.constant 0 : i32
    %13 = arith.cmpi slt, %6, %c0_i32_6 : i32
    %14 = vector.broadcast %13 : i1 to vector<16x1024xi1>
    %15 = vector.broadcast %14 : vector<16x1024xi1> to vector<16x1024xi1>
    %16 = arith.xori %12, %15 : vector<16x1024xi1>
    %17 = arith.andi %16, %10 : vector<16x1024xi1>
    %18 = vector.broadcast %6 : i32 to vector<16x1024xi32>
    %19 = arith.addi %8, %18 : vector<16x1024xi32>
    %20 = arith.select %17, %19, %8 : vector<16x1024xi1>, vector<16x1024xi32>
    %cst_7 = arith.constant 0.000000e+00 : f32
    %21 = vector.broadcast %cst_7 : f32 to vector<16x33xf32>
    %22 = vector.extract_strided_slice %3 {offsets = [0, 0], sizes = [16, 991], strides = [1, 1]} : vector<16x1024xf32> to vector<16x991xf32>
    %23 = tpu.concatenate %21, %22 in 1 : vector<16x33xf32>, vector<16x991xf32> -> vector<16x1024xf32>
    %c1_i32_8 = arith.constant 1 : i32
    %24 = vector.broadcast %c1_i32_8 : i32 to vector<16x1024xi32>
    %25 = arith.cmpi sge, %20, %24 : vector<16x1024xi32>
    %cst_9 = arith.constant 0.000000e+00 : f32
    %26 = vector.broadcast %cst_9 : f32 to vector<16x1024xf32>
    %27 = arith.select %25, %23, %26 : vector<16x1024xi1>, vector<16x1024xf32>
    %cst_10 = arith.constant 0.000000e+00 : f32
    %28 = vector.broadcast %cst_10 : f32 to vector<16x32xf32>
    %29 = vector.extract_strided_slice %3 {offsets = [0, 0], sizes = [16, 992], strides = [1, 1]} : vector<16x1024xf32> to vector<16x992xf32>
    %30 = tpu.concatenate %28, %29 in 1 : vector<16x32xf32>, vector<16x992xf32> -> vector<16x1024xf32>
    %cst_11 = arith.constant 0.000000e+00 : f32
    %31 = vector.broadcast %cst_11 : f32 to vector<16x31xf32>
    %32 = vector.extract_strided_slice %3 {offsets = [0, 0], sizes = [16, 993], strides = [1, 1]} : vector<16x1024xf32> to vector<16x993xf32>
    %33 = tpu.concatenate %31, %32 in 1 : vector<16x31xf32>, vector<16x993xf32> -> vector<16x1024xf32>
    %c31_i32 = arith.constant 31 : i32
    %34 = vector.broadcast %c31_i32 : i32 to vector<16x1024xi32>
    %35 = arith.cmpi slt, %20, %34 : vector<16x1024xi32>
    %cst_12 = arith.constant 0.000000e+00 : f32
    %36 = vector.broadcast %cst_12 : f32 to vector<16x1024xf32>
    %37 = arith.select %35, %33, %36 : vector<16x1024xi1>, vector<16x1024xf32>
    %cst_13 = arith.constant 0.000000e+00 : f32
    %38 = vector.broadcast %cst_13 : f32 to vector<16x1xf32>
    %39 = vector.extract_strided_slice %3 {offsets = [0, 0], sizes = [16, 1023], strides = [1, 1]} : vector<16x1024xf32> to vector<16x1023xf32>
    %40 = tpu.concatenate %38, %39 in 1 : vector<16x1xf32>, vector<16x1023xf32> -> vector<16x1024xf32>
    %c1_i32_14 = arith.constant 1 : i32
    %41 = vector.broadcast %c1_i32_14 : i32 to vector<16x1024xi32>
    %42 = arith.cmpi sge, %20, %41 : vector<16x1024xi32>
    %cst_15 = arith.constant 0.000000e+00 : f32
    %43 = vector.broadcast %cst_15 : f32 to vector<16x1024xf32>
    %44 = arith.select %42, %40, %43 : vector<16x1024xi1>, vector<16x1024xf32>
    %45 = vector.extract_strided_slice %3 {offsets = [0, 1], sizes = [16, 1023], strides = [1, 1]} : vector<16x1024xf32> to vector<16x1023xf32>
    %cst_16 = arith.constant 0.000000e+00 : f32
    %46 = vector.broadcast %cst_16 : f32 to vector<16x1xf32>
    %47 = tpu.concatenate %45, %46 in 1 : vector<16x1023xf32>, vector<16x1xf32> -> vector<16x1024xf32>
    %c31_i32_17 = arith.constant 31 : i32
    %48 = vector.broadcast %c31_i32_17 : i32 to vector<16x1024xi32>
    %49 = arith.cmpi slt, %20, %48 : vector<16x1024xi32>
    %cst_18 = arith.constant 0.000000e+00 : f32
    %50 = vector.broadcast %cst_18 : f32 to vector<16x1024xf32>
    %51 = arith.select %49, %47, %50 : vector<16x1024xi1>, vector<16x1024xf32>
    %52 = vector.extract_strided_slice %3 {offsets = [0, 31], sizes = [16, 993], strides = [1, 1]} : vector<16x1024xf32> to vector<16x993xf32>
    %cst_19 = arith.constant 0.000000e+00 : f32
    %53 = vector.broadcast %cst_19 : f32 to vector<16x31xf32>
    %54 = tpu.concatenate %52, %53 in 1 : vector<16x993xf32>, vector<16x31xf32> -> vector<16x1024xf32>
    %c1_i32_20 = arith.constant 1 : i32
    %55 = vector.broadcast %c1_i32_20 : i32 to vector<16x1024xi32>
    %56 = arith.cmpi sge, %20, %55 : vector<16x1024xi32>
    %cst_21 = arith.constant 0.000000e+00 : f32
    %57 = vector.broadcast %cst_21 : f32 to vector<16x1024xf32>
    %58 = arith.select %56, %54, %57 : vector<16x1024xi1>, vector<16x1024xf32>
    %59 = vector.extract_strided_slice %3 {offsets = [0, 32], sizes = [16, 992], strides = [1, 1]} : vector<16x1024xf32> to vector<16x992xf32>
    %cst_22 = arith.constant 0.000000e+00 : f32
    %60 = vector.broadcast %cst_22 : f32 to vector<16x32xf32>
    %61 = tpu.concatenate %59, %60 in 1 : vector<16x992xf32>, vector<16x32xf32> -> vector<16x1024xf32>
    %62 = vector.extract_strided_slice %3 {offsets = [0, 33], sizes = [16, 991], strides = [1, 1]} : vector<16x1024xf32> to vector<16x991xf32>
    %cst_23 = arith.constant 0.000000e+00 : f32
    %63 = vector.broadcast %cst_23 : f32 to vector<16x33xf32>
    %64 = tpu.concatenate %62, %63 in 1 : vector<16x991xf32>, vector<16x33xf32> -> vector<16x1024xf32>
    %c31_i32_24 = arith.constant 31 : i32
    %65 = vector.broadcast %c31_i32_24 : i32 to vector<16x1024xi32>
    %66 = arith.cmpi slt, %20, %65 : vector<16x1024xi32>
    %cst_25 = arith.constant 0.000000e+00 : f32
    %67 = vector.broadcast %cst_25 : f32 to vector<16x1024xf32>
    %68 = arith.select %66, %64, %67 : vector<16x1024xi1>, vector<16x1024xf32>
    %69 = tpu.concatenate %27, %30, %37, %44, %3, %51, %58, %61, %68 in 0 : vector<16x1024xf32>, vector<16x1024xf32>, vector<16x1024xf32>, vector<16x1024xf32>, vector<16x1024xf32>, vector<16x1024xf32>, vector<16x1024xf32>, vector<16x1024xf32>, vector<16x1024xf32> -> vector<144x1024xf32>
    %c0_26 = arith.constant 0 : index
    %c0_27 = arith.constant 0 : index
    %70 = vector.load %arg3[%c0_26, %c0_27] : memref<32x144xf32, #tpu.memory_space<vmem>>, vector<32x144xf32>
    %cst_28 = arith.constant dense<0.000000e+00> : vector<32x1024xf32>
    %71 = tpu.matmul %70, %69, %cst_28 {dimension_numbers = #tpu.dot_dimension_numbers<[1], [0], [0], [1], [0, 0, 1, 1], [], []>} : vector<32x144xf32>, vector<144x1024xf32>, vector<32x1024xf32> -> vector<32x1024xf32>
    %c0_29 = arith.constant 0 : index
    %c0_30 = arith.constant 0 : index
    %72 = vector.load %arg4[%c0_29, %c0_30] : memref<32x1xf32, #tpu.memory_space<vmem>>, vector<32x1xf32>
    %73 = vector.broadcast %72 : vector<32x1xf32> to vector<32x1024xf32>
    %74 = arith.addf %71, %73 : vector<32x1024xf32>
    %c0_31 = arith.constant 0 : index
    %c0_32 = arith.constant 0 : index
    %c0_33 = arith.constant 0 : index
    %75 = vector.load %arg5[%c0_31, %c0_32, %c0_33] : memref<1x32x1024xf32, #tpu.memory_space<vmem>>, vector<1x32x1024xf32>
    %76 = vector.shape_cast %75 : vector<1x32x1024xf32> to vector<32x1024xf32>
    %77 = vector.shape_cast %74 : vector<32x1024xf32> to vector<1x32x1024xf32>
    tpu.vector_store %arg5[%c0_31, %c0_32, %c0_33], %77 {strides = array<i32>} : memref<1x32x1024xf32, #tpu.memory_space<vmem>>, vector<1x32x1024xf32>,
    return
  }
  func.func @transform_0(%arg0: i32) -> (i32, i32, i32) {
    %c0_i32 = arith.constant 0 : i32
    %c0_i32_0 = arith.constant 0 : i32
    %c0_i32_1 = arith.constant 0 : i32
    return %arg0, %c0_i32, %c0_i32_0 : i32, i32, i32
  }
  func.func @transform_1(%arg0: i32) -> (i32, i32) {
    %c0_i32 = arith.constant 0 : i32
    %c0_i32_0 = arith.constant 0 : i32
    %c0_i32_1 = arith.constant 0 : i32
    return %c0_i32, %c0_i32_0 : i32, i32
  }
  func.func @transform_2(%arg0: i32) -> (i32, i32) {
    %c0_i32 = arith.constant 0 : i32
    %c0_i32_0 = arith.constant 0 : i32
    %c0_i32_1 = arith.constant 0 : i32
    return %c0_i32, %c0_i32_0 : i32, i32
  }
  func.func @transform_3(%arg0: i32) -> (i32, i32) {
    %c0_i32 = arith.constant 0 : i32
    %c0_i32_0 = arith.constant 0 : i32
    %c0_i32_1 = arith.constant 0 : i32
    return %c0_i32, %c0_i32_0 : i32, i32
  }
  func.func @transform_4(%arg0: i32) -> (i32, i32, i32) {
    %c0_i32 = arith.constant 0 : i32
    %c0_i32_0 = arith.constant 0 : i32
    %c0_i32_1 = arith.constant 0 : i32
    return %arg0, %c0_i32, %c0_i32_0 : i32, i32, i32
  }
}

</mosaic_0001>

<llo_original>
// kernel: tpu_custom_call.1
$region0: #{tpu_custom_call.1}
  #allocation0 [shape = 'u32[]', space=smem, size = 0x4, offset = 0x4, fixed_abs, tag = 'smem constant byte address 0x4 - core index']
  #allocation1 [shape = 'u32[72,128]{1,0:T(1,128)}', space=vmem, size = 0x9000, scoped, tag = 'internal scratch']
  %s0 = inlined_call_operand.hbm [shape: f32[2,16,256], index: 0, kind: input, shape index: {}]
  %s1 = inlined_call_operand.hbm [shape: f32[256,1024], index: 1, kind: input, shape index: {}]
  %s2 = inlined_call_operand.hbm [shape: f32[32,144], index: 2, kind: input, shape index: {}]
  %s3 = inlined_call_operand.vmem [shape: f32[32,1], index: 3, kind: input, shape index: {}]
  %s4 = inlined_call_operand.hbm [shape: f32[2,32,1024], index: 4, kind: output, shape index: {}]
  %s5 = sld [smem:[#allocation0]]
  $region61: #{tpu_custom_call.1} parent=0
    _
  %s7 = ssub.s32 1, %s5
  %s8 = scalar_select 0, %s7, %s5
  $region1: #{tpu_custom_call.1} parent=0
    #allocation2 [shape = 'u8[32768]{0}', space=vmem, size = 0x8000, scoped, tag = 'input window, operand 0']
    #allocation3 [shape = 's32[2]{0}', space=sflag, size = 0x8, scoped, tag = 'scoped memory for tpu_custom_call.1']
    #allocation4 [shape = 's32[2]{0}', space=sflag, size = 0x8, scoped, tag = 'scoped memory for tpu_custom_call.1']
    #allocation5 [shape = 'u8[1048576]{0}', space=vmem, size = 0x100000, scoped, tag = 'input window, operand 1, single buffered']
    #allocation6 [shape = 's32[1]{0}', space=sflag, size = 0x4, scoped, tag = 'scoped memory for tpu_custom_call.1']
    #allocation7 [shape = 'u8[32768]{0}', space=vmem, size = 0x8000, scoped, tag = 'input window, operand 2, single buffered']
    #allocation8 [shape = 'u8[262144]{0}', space=vmem, size = 0x40000, scoped, tag = 'output window, operand 0']
    %9 = vsyncpa [#allocation3], 0
    %s10 = scalar_lea.sflag [#allocation3], 1
    %11 = vsyncpa %s10, 0
    %12 = vsyncpa [#allocation6], 0
    %13 = vsyncpa [#allocation4], 0
    %s14 = scalar_lea.sflag [#allocation4], 1
    %15 = vsyncpa %s14, 0
    loop: start=0, step=1, limit=4
    $region2: #{tpu_custom_call.1} parent=1 // loop_pre_header
      _
    $region3: #{tpu_custom_call.1} parent=1 // loop_header
      %s17 = sphi 0, %s21
      %p18 = scmp.ge.s32.totalorder %s17, 4
      %s27 = sphi 0, %s29
      %s30 = sphi 0, %s27
      %s31 = sphi 0, %s30
      %s47 = sphi 0, %s31
      %s51 = sphi 0, %s51
      %s53 = sphi 0, %s51
      %s54 = sphi 0, %s53
      %s68 = sphi 0, %s54
      %s72 = sphi 0, %s72
      %s74 = sphi 0, %s72
      %s75 = sphi 0, %s74
      %s89 = sphi 0, %s75
      %s93 = sphi 0, %s93
      %s95 = sphi 0, %s93
      %s96 = sphi 0, %s95
      %s110 = sphi 0, %s96
      %s116 = sphi 0, %s118
      %s119 = sphi 0, %s116
      %s120 = sphi 0, %s119
      %s136 = sphi 0, %s120
    $region4: #{tpu_custom_call.1} parent=1 // loop_header_branch
      %20 = sbr.rel (%p18) target = $region8
    $region5: #{tpu_custom_call.1} parent=1 // loop_body
      %s22 = ssub.s32 %s17, 1
      %s23 = ssub.s32 %s17, 2
      %s24 = sadd.s32 %s17, 1
      %s25 = ssub.s32 %s17, %s24
      %p26 = scmp.eq.s32.totalorder %s25, 0
      %s28 = sadd.s32 %s27, 1
      %s29 = scalar_select %p26, %s27, %s28
      %p32 = pneg %p26
      %p33 = scmp.eq.s32.totalorder %s17, 1
      %p34 = por %p32, %p33
      %p35 = scmp.ne.s32.totalorder %s27, %s30
      %p36 = scmp.eq.s32.totalorder %s17, 0
      %p37 = por %p35, %p36
      %p38 = scmp.ne.s32.totalorder %s27, %s30
      %p39 = scmp.eq.s32.totalorder %s22, 1
      %p40 = por %p38, %p39
      %p41 = scmp.ne.s32.totalorder %s30, %s31
      %p42 = scmp.eq.s32.totalorder %s22, 0
      %p43 = por %p41, %p42
      %p44 = scmp.ne.s32.totalorder %s30, %s31
      %p45 = scmp.eq.s32.totalorder %s23, 1
      %p46 = por %p44, %p45
      %p48 = scmp.ne.s32.totalorder %s31, %s47
      %p49 = scmp.eq.s32.totalorder %s23, 0
      %p50 = por %p48, %p49
      %s52 = sadd.s32 %s51, 1
      %p55 = scmp.eq.s32.totalorder %s17, 1
      %p56 = scmp.ne.s32.totalorder %s51, %s53
      %p57 = scmp.eq.s32.totalorder %s17, 0
      %p58 = por %p56, %p57
      %p59 = scmp.ne.s32.totalorder %s51, %s53
      %p60 = scmp.eq.s32.totalorder %s22, 1
      %p61 = por %p59, %p60
      %p62 = scmp.ne.s32.totalorder %s53, %s54
      %p63 = scmp.eq.s32.totalorder %s22, 0
      %p64 = por %p62, %p63
      %p65 = scmp.ne.s32.totalorder %s53, %s54
      %p66 = scmp.eq.s32.totalorder %s23, 1
      %p67 = por %p65, %p66
      %p69 = scmp.ne.s32.totalorder %s54, %s68
      %p70 = scmp.eq.s32.totalorder %s23, 0
      %p71 = por %p69, %p70
      %s73 = sadd.s32 %s72, 1
      %p76 = scmp.eq.s32.totalorder %s17, 1
      %p77 = scmp.ne.s32.totalorder %s72, %s74
      %p78 = scmp.eq.s32.totalorder %s17, 0
      %p79 = por %p77, %p78
      %p80 = scmp.ne.s32.totalorder %s72, %s74
      %p81 = scmp.eq.s32.totalorder %s22, 1
      %p82 = por %p80, %p81
      %p83 = scmp.ne.s32.totalorder %s74, %s75
      %p84 = scmp.eq.s32.totalorder %s22, 0
      %p85 = por %p83, %p84
      %p86 = scmp.ne.s32.totalorder %s74, %s75
      %p87 = scmp.eq.s32.totalorder %s23, 1
      %p88 = por %p86, %p87
      %p90 = scmp.ne.s32.totalorder %s75, %s89
      %p91 = scmp.eq.s32.totalorder %s23, 0
      %p92 = por %p90, %p91
      %s94 = sadd.s32 %s93, 1
      %p97 = scmp.eq.s32.totalorder %s17, 1
      %p98 = scmp.ne.s32.totalorder %s93, %s95
      %p99 = scmp.eq.s32.totalorder %s17, 0
      %p100 = por %p98, %p99
      %p101 = scmp.ne.s32.totalorder %s93, %s95
      %p102 = scmp.eq.s32.totalorder %s22, 1
      %p103 = por %p101, %p102
      %p104 = scmp.ne.s32.totalorder %s95, %s96
      %p105 = scmp.eq.s32.totalorder %s22, 0
      %p106 = por %p104, %p105
      %p107 = scmp.ne.s32.totalorder %s95, %s96
      %p108 = scmp.eq.s32.totalorder %s23, 1
      %p109 = por %p107, %p108
      %p111 = scmp.ne.s32.totalorder %s96, %s110
      %p112 = scmp.eq.s32.totalorder %s23, 0
      %p113 = por %p111, %p112
      %s114 = ssub.s32 %s17, %s24
      %p115 = scmp.eq.s32.totalorder %s114, 0
      %s117 = sadd.s32 %s116, 1
      %s118 = scalar_select %p115, %s116, %s117
      %p121 = pneg %p115
      %p122 = scmp.eq.s32.totalorder %s17, 1
      %p123 = por %p121, %p122
      %p124 = scmp.ne.s32.totalorder %s116, %s119
      %p125 = scmp.eq.s32.totalorder %s17, 0
      %p126 = por %p124, %p125
      %p127 = scmp.ne.s32.totalorder %s116, %s119
      %p128 = scmp.eq.s32.totalorder %s22, 1
      %p129 = por %p127, %p128
      %p130 = scmp.ne.s32.totalorder %s119, %s120
      %p131 = scmp.eq.s32.totalorder %s22, 0
      %p132 = por %p130, %p131
      %p133 = scmp.ne.s32.totalorder %s119, %s120
      %p134 = scmp.eq.s32.totalorder %s23, 1
      %p135 = por %p133, %p134
      %p137 = scmp.ne.s32.totalorder %s120, %s136
      %p138 = scmp.eq.s32.totalorder %s23, 0
      %p139 = por %p137, %p138
      %p140 = scmp.le.s32.totalorder 1, %s17
      %p141 = scmp.lt.s32.totalorder %s17, 3
      %p142 = pnand %p140, %p141
      %p143 = pneg %p142
      // Predicated region
      $region9: #{tpu_custom_call.1} parent=5 // pred_check
        _
      $region10: #{tpu_custom_call.1} parent=5 // pred_check_branch
        %145 = sbr.rel (%p142) target = $region12
      $region11: #{tpu_custom_call.1} parent=5 // pred_region
        %s146 = ssub.s32 %s17, 1
        // Predicated region
        $region13: #{tpu_custom_call.1} parent=11 // pred_check
          %p147 = pneg %p64
        $region14: #{tpu_custom_call.1} parent=11 // pred_check_branch
          %149 = sbr.rel (%p147) target = $region16
        $region15: #{tpu_custom_call.1} parent=11 // pred_region
          %151 = vsyncadd [#allocation6], 0
          %s152 = sshll.u32 %s1, 4
          %s153 = int_to_ptr.hbm [resolvable:$true] %s152
          %s154 = sshll.u32 [#allocation5], 4
          %s155 = int_to_ptr.vmem [resolvable:$true] %s154
          %160 = dma.hbm_to_vmem [thread:$0]  %s153, 32768, %s155, [#allocation6], 1024, 1024, 64
        $region16: #{tpu_custom_call.1} parent=11 // pred_fallthru
          _
        // Predicated region
        $region17: #{tpu_custom_call.1} parent=11 // pred_check
          %p161 = pneg %p85
        $region18: #{tpu_custom_call.1} parent=11 // pred_check_branch
          %163 = sbr.rel (%p161) target = $region20
        $region19: #{tpu_custom_call.1} parent=11 // pred_region
          %165 = vsyncadd [#allocation6], 0
          %s166 = sshll.u32 %s2, 4
          %s167 = int_to_ptr.hbm [resolvable:$true] %s166
          %s168 = sshll.u32 [#allocation7], 4
          %s169 = int_to_ptr.vmem [resolvable:$true] %s168
          %174 = dma.hbm_to_vmem [thread:$0]  %s167, 1024, %s169, [#allocation6], 256, 256, 16
        $region20: #{tpu_custom_call.1} parent=11 // pred_fallthru
          _
        // Predicated region
        $region21: #{tpu_custom_call.1} parent=11 // pred_check
          %p175 = pneg %p106
        $region22: #{tpu_custom_call.1} parent=11 // pred_check_branch
          %177 = sbr.rel (%p175) target = $region24
        $region23: #{tpu_custom_call.1} parent=11 // pred_region
          _
        $region24: #{tpu_custom_call.1} parent=11 // pred_fallthru
          _
      $region12: #{tpu_custom_call.1} parent=5 // pred_fallthru
        _
      %p178 = scmp.lt.s32.totalorder %s17, 2
      // Predicated region
      $region25: #{tpu_custom_call.1} parent=5 // pred_check
        %p179 = pneg %p178
      $region26: #{tpu_custom_call.1} parent=5 // pred_check_branch
        %181 = sbr.rel (%p179) target = $region28
      $region27: #{tpu_custom_call.1} parent=5 // pred_region
        // Predicated region
        $region29: #{tpu_custom_call.1} parent=27 // pred_check
          %p182 = pneg %p37
        $region30: #{tpu_custom_call.1} parent=27 // pred_check_branch
          %184 = sbr.rel (%p182) target = $region32
        $region31: #{tpu_custom_call.1} parent=27 // pred_region
          %s185 = sand.u32 %s27, 1
          %s186 = scalar_lea.sflag [#allocation3], %s185
          %s187 = sand.u32 %s27, 1
          %s188 = smul.addr %s187, 32
          %s189 = scalar_lea.vmem [#allocation2], %s188
          %191 = vsyncadd %s186, 0
          %s192 = smul.addr %s17, 4
          %s193 = smul.addr %s192, 8
          %s194 = scalar_lea.hbm %s0, %s193
          %s195 = sshll.u32 %s194, 4
          %s196 = int_to_ptr.hbm [resolvable:$true] %s195
          %s197 = sshll.u32 %s189, 4
          %s198 = int_to_ptr.vmem [resolvable:$true] %s197
          %203 = dma.hbm_to_vmem [thread:$0]  %s196, 512, %s198, %s186, 256, 256, 16
        $region32: #{tpu_custom_call.1} parent=27 // pred_fallthru
          _
      $region28: #{tpu_custom_call.1} parent=5 // pred_fallthru
        _
      %p204 = scmp.le.s32.totalorder 1, %s17
      %p205 = scmp.lt.s32.totalorder %s17, 3
      %p206 = pnand %p204, %p205
      %p207 = pneg %p206
      // Predicated region
      $region33: #{tpu_custom_call.1} parent=5 // pred_check
        _
      $region34: #{tpu_custom_call.1} parent=5 // pred_check_branch
        %209 = sbr.rel (%p206) target = $region36
      $region35: #{tpu_custom_call.1} parent=5 // pred_region
        %s210 = ssub.s32 %s17, 1
        %s211 = sand.u32 %s30, 1
        %s212 = scalar_lea.sflag [#allocation3], %s211
        %s213 = sand.u32 %s30, 1
        %s214 = smul.addr %s213, 32
        %s215 = scalar_lea.vmem [#allocation2], %s214
        // Predicated region
        $region37: #{tpu_custom_call.1} parent=35 // pred_check
          %p216 = pneg %p43
        $region38: #{tpu_custom_call.1} parent=35 // pred_check_branch
          %218 = sbr.rel (%p216) target = $region40
        $region39: #{tpu_custom_call.1} parent=35 // pred_region
          %220 = dma.done %s212, 512
        $region40: #{tpu_custom_call.1} parent=35 // pred_fallthru
          _
        // Predicated region
        $region41: #{tpu_custom_call.1} parent=35 // pred_check
          %p221 = pneg %p64
        $region42: #{tpu_custom_call.1} parent=35 // pred_check_branch
          %223 = sbr.rel (%p221) target = $region44
        $region43: #{tpu_custom_call.1} parent=35 // pred_region
          %225 = dma.done [#allocation6], 32768
        $region44: #{tpu_custom_call.1} parent=35 // pred_fallthru
          _
        // Predicated region
        $region45: #{tpu_custom_call.1} parent=35 // pred_check
          %p226 = pneg %p85
        $region46: #{tpu_custom_call.1} parent=35 // pred_check_branch
          %228 = sbr.rel (%p226) target = $region48
        $region47: #{tpu_custom_call.1} parent=35 // pred_region
          %230 = dma.done [#allocation6], 1024
        $region48: #{tpu_custom_call.1} parent=35 // pred_fallthru
          _
        %s231 = sand.u32 %s30, 1
        %s232 = scalar_lea.sflag [#allocation3], %s231
        %s233 = sand.u32 %s30, 1
        %s234 = smul.addr %s233, 32
        %s235 = scalar_lea.vmem [#allocation2], %s234
        %p236 = pneg %p43
        %p237 = pneg %p40
        %p238 = pneg %p64
        %p239 = pneg %p61
        %p240 = pneg %p85
        %p241 = pneg %p82
        %p242 = pneg %p106
        %p243 = pneg %p103
        %p244 = pneg %p132
        %p245 = pneg %p129
        %s246 = sand.u32 %s119, 1
        %s247 = scalar_lea.sflag [#allocation4], %s246
        %s248 = sand.u32 %s119, 1
        %s249 = smul.addr %s248, 256
        %s250 = scalar_lea.vmem [#allocation8], %s249
        %v251 = vld [vmem:[%s215] sm:$0xff]
        %v252 = vld [vmem:[%s215 + $0x8] sm:$0xff]
        %v253 = vld [vmem:[%s215 + $0x10] sm:$0xff]
        %v254 = vld [vmem:[%s215 + $0x18] sm:$0xff]
        %v255 = vld [vmem:[#allocation5] sm:$0xff]
        %v256 = vld [vmem:[#allocation5 + $0x8] sm:$0xff]
        %v257 = vld [vmem:[#allocation5 + $0x10] sm:$0xff]
        %v258 = vld [vmem:[#allocation5 + $0x18] sm:$0xff]
        %v259 = vld [vmem:[#allocation5 + $0x20] sm:$0xff]
        %v260 = vld [vmem:[#allocation5 + $0x28] sm:$0xff]
        %v261 = vld [vmem:[#allocation5 + $0x30] sm:$0xff]
        %v262 = vld [vmem:[#allocation5 + $0x38] sm:$0xff]
        %v263 = vld [vmem:[#allocation5 + $0x40] sm:$0xff]
        %v264 = vld [vmem:[#allocation5 + $0x48] sm:$0xff]
        %v265 = vld [vmem:[#allocation5 + $0x50] sm:$0xff]
        %v266 = vld [vmem:[#allocation5 + $0x58] sm:$0xff]
        %v267 = vld [vmem:[#allocation5 + $0x60] sm:$0xff]
        %v268 = vld [vmem:[#allocation5 + $0x68] sm:$0xff]
        %v269 = vld [vmem:[#allocation5 + $0x70] sm:$0xff]
        %v270 = vld [vmem:[#allocation5 + $0x78] sm:$0xff]
        %v271 = vld [vmem:[#allocation5 + $0x80] sm:$0xff]
        %v272 = vld [vmem:[#allocation5 + $0x88] sm:$0xff]
        %v273 = vld [vmem:[#allocation5 + $0x90] sm:$0xff]
        %v274 = vld [vmem:[#allocation5 + $0x98] sm:$0xff]
        %v275 = vld [vmem:[#allocation5 + $0xa0] sm:$0xff]
        %v276 = vld [vmem:[#allocation5 + $0xa8] sm:$0xff]
        %v277 = vld [vmem:[#allocation5 + $0xb0] sm:$0xff]
        %v278 = vld [vmem:[#allocation5 + $0xb8] sm:$0xff]
        %v279 = vld [vmem:[#allocation5 + $0xc0] sm:$0xff]
        %v280 = vld [vmem:[#allocation5 + $0xc8] sm:$0xff]
        %v281 = vld [vmem:[#allocation5 + $0xd0] sm:$0xff]
        %v282 = vld [vmem:[#allocation5 + $0xd8] sm:$0xff]
        %v283 = vld [vmem:[#allocation5 + $0xe0] sm:$0xff]
        %v284 = vld [vmem:[#allocation5 + $0xe8] sm:$0xff]
        %v285 = vld [vmem:[#allocation5 + $0xf0] sm:$0xff]
        %v286 = vld [vmem:[#allocation5 + $0xf8] sm:$0xff]
        %v287 = vld [vmem:[#allocation5 + $0x100] sm:$0xff]
        %v288 = vld [vmem:[#allocation5 + $0x108] sm:$0xff]
        %v289 = vld [vmem:[#allocation5 + $0x110] sm:$0xff]
        %v290 = vld [vmem:[#allocation5 + $0x118] sm:$0xff]
        %v291 = vld [vmem:[#allocation5 + $0x120] sm:$0xff]
        %v292 = vld [vmem:[#allocation5 + $0x128] sm:$0xff]
        %v293 = vld [vmem:[#allocation5 + $0x130] sm:$0xff]
        %v294 = vld [vmem:[#allocation5 + $0x138] sm:$0xff]
        %v295 = vld [vmem:[#allocation5 + $0x140] sm:$0xff]
        %v296 = vld [vmem:[#allocation5 + $0x148] sm:$0xff]
        %v297 = vld [vmem:[#allocation5 + $0x150] sm:$0xff]
        %v298 = vld [vmem:[#allocation5 + $0x158] sm:$0xff]
        %v299 = vld [vmem:[#allocation5 + $0x160] sm:$0xff]
        %v300 = vld [vmem:[#allocation5 + $0x168] sm:$0xff]
        %v301 = vld [vmem:[#allocation5 + $0x170] sm:$0xff]
        %v302 = vld [vmem:[#allocation5 + $0x178] sm:$0xff]
        %v303 = vld [vmem:[#allocation5 + $0x180] sm:$0xff]
        %v304 = vld [vmem:[#allocation5 + $0x188] sm:$0xff]
        %v305 = vld [vmem:[#allocation5 + $0x190] sm:$0xff]
        %v306 = vld [vmem:[#allocation5 + $0x198] sm:$0xff]
        %v307 = vld [vmem:[#allocation5 + $0x1a0] sm:$0xff]
        %v308 = vld [vmem:[#allocation5 + $0x1a8] sm:$0xff]
        %v309 = vld [vmem:[#allocation5 + $0x1b0] sm:$0xff]
        %v310 = vld [vmem:[#allocation5 + $0x1b8] sm:$0xff]
        %v311 = vld [vmem:[#allocation5 + $0x1c0] sm:$0xff]
        %v312 = vld [vmem:[#allocation5 + $0x1c8] sm:$0xff]
        %v313 = vld [vmem:[#allocation5 + $0x1d0] sm:$0xff]
        %v314 = vld [vmem:[#allocation5 + $0x1d8] sm:$0xff]
        %v315 = vld [vmem:[#allocation5 + $0x1e0] sm:$0xff]
        %v316 = vld [vmem:[#allocation5 + $0x1e8] sm:$0xff]
        %v317 = vld [vmem:[#allocation5 + $0x1f0] sm:$0xff]
        %v318 = vld [vmem:[#allocation5 + $0x1f8] sm:$0xff]
        %v319 = vld [vmem:[#allocation5 + $0x200] sm:$0xff]
        %v320 = vld [vmem:[#allocation5 + $0x208] sm:$0xff]
        %v321 = vld [vmem:[#allocation5 + $0x210] sm:$0xff]
        %v322 = vld [vmem:[#allocation5 + $0x218] sm:$0xff]
        %v323 = vld [vmem:[#allocation5 + $0x220] sm:$0xff]
        %v324 = vld [vmem:[#allocation5 + $0x228] sm:$0xff]
        %v325 = vld [vmem:[#allocation5 + $0x230] sm:$0xff]
        %v326 = vld [vmem:[#allocation5 + $0x238] sm:$0xff]
        %v327 = vld [vmem:[#allocation5 + $0x240] sm:$0xff]
        %v328 = vld [vmem:[#allocation5 + $0x248] sm:$0xff]
        %v329 = vld [vmem:[#allocation5 + $0x250] sm:$0xff]
        %v330 = vld [vmem:[#allocation5 + $0x258] sm:$0xff]
        %v331 = vld [vmem:[#allocation5 + $0x260] sm:$0xff]
        %v332 = vld [vmem:[#allocation5 + $0x268] sm:$0xff]
        %v333 = vld [vmem:[#allocation5 + $0x270] sm:$0xff]
        %v334 = vld [vmem:[#allocation5 + $0x278] sm:$0xff]
        %v335 = vld [vmem:[#allocation5 + $0x280] sm:$0xff]
        %v336 = vld [vmem:[#allocation5 + $0x288] sm:$0xff]
        %v337 = vld [vmem:[#allocation5 + $0x290] sm:$0xff]
        %v338 = vld [vmem:[#allocation5 + $0x298] sm:$0xff]
        %v339 = vld [vmem:[#allocation5 + $0x2a0] sm:$0xff]
        %v340 = vld [vmem:[#allocation5 + $0x2a8] sm:$0xff]
        %v341 = vld [vmem:[#allocation5 + $0x2b0] sm:$0xff]
        %v342 = vld [vmem:[#allocation5 + $0x2b8] sm:$0xff]
        %v343 = vld [vmem:[#allocation5 + $0x2c0] sm:$0xff]
        %v344 = vld [vmem:[#allocation5 + $0x2c8] sm:$0xff]
        %v345 = vld [vmem:[#allocation5 + $0x2d0] sm:$0xff]
        %v346 = vld [vmem:[#allocation5 + $0x2d8] sm:$0xff]
        %v347 = vld [vmem:[#allocation5 + $0x2e0] sm:$0xff]
        %v348 = vld [vmem:[#allocation5 + $0x2e8] sm:$0xff]
        %v349 = vld [vmem:[#allocation5 + $0x2f0] sm:$0xff]
        %v350 = vld [vmem:[#allocation5 + $0x2f8] sm:$0xff]
        %v351 = vld [vmem:[#allocation5 + $0x300] sm:$0xff]
        %v352 = vld [vmem:[#allocation5 + $0x308] sm:$0xff]
        %v353 = vld [vmem:[#allocation5 + $0x310] sm:$0xff]
        %v354 = vld [vmem:[#allocation5 + $0x318] sm:$0xff]
        %v355 = vld [vmem:[#allocation5 + $0x320] sm:$0xff]
        %v356 = vld [vmem:[#allocation5 + $0x328] sm:$0xff]
        %v357 = vld [vmem:[#allocation5 + $0x330] sm:$0xff]
        %v358 = vld [vmem:[#allocation5 + $0x338] sm:$0xff]
        %v359 = vld [vmem:[#allocation5 + $0x340] sm:$0xff]
        %v360 = vld [vmem:[#allocation5 + $0x348] sm:$0xff]
        %v361 = vld [vmem:[#allocation5 + $0x350] sm:$0xff]
        %v362 = vld [vmem:[#allocation5 + $0x358] sm:$0xff]
        %v363 = vld [vmem:[#allocation5 + $0x360] sm:$0xff]
        %v364 = vld [vmem:[#allocation5 + $0x368] sm:$0xff]
        %v365 = vld [vmem:[#allocation5 + $0x370] sm:$0xff]
        %v366 = vld [vmem:[#allocation5 + $0x378] sm:$0xff]
        %v367 = vld [vmem:[#allocation5 + $0x380] sm:$0xff]
        %v368 = vld [vmem:[#allocation5 + $0x388] sm:$0xff]
        %v369 = vld [vmem:[#allocation5 + $0x390] sm:$0xff]
        %v370 = vld [vmem:[#allocation5 + $0x398] sm:$0xff]
        %v371 = vld [vmem:[#allocation5 + $0x3a0] sm:$0xff]
        %v372 = vld [vmem:[#allocation5 + $0x3a8] sm:$0xff]
        %v373 = vld [vmem:[#allocation5 + $0x3b0] sm:$0xff]
        %v374 = vld [vmem:[#allocation5 + $0x3b8] sm:$0xff]
        %v375 = vld [vmem:[#allocation5 + $0x3c0] sm:$0xff]
        %v376 = vld [vmem:[#allocation5 + $0x3c8] sm:$0xff]
        %v377 = vld [vmem:[#allocation5 + $0x3d0] sm:$0xff]
        %v378 = vld [vmem:[#allocation5 + $0x3d8] sm:$0xff]
        %v379 = vld [vmem:[#allocation5 + $0x3e0] sm:$0xff]
        %v380 = vld [vmem:[#allocation5 + $0x3e8] sm:$0xff]
        %v381 = vld [vmem:[#allocation5 + $0x3f0] sm:$0xff]
        %v382 = vld [vmem:[#allocation5 + $0x3f8] sm:$0xff]
        %v383 = vld [vmem:[#allocation5 + $0x400] sm:$0xff]
        %v384 = vld [vmem:[#allocation5 + $0x408] sm:$0xff]
        %v385 = vld [vmem:[#allocation5 + $0x410] sm:$0xff]
        %v386 = vld [vmem:[#allocation5 + $0x418] sm:$0xff]
        %v387 = vld [vmem:[#allocation5 + $0x420] sm:$0xff]
        %v388 = vld [vmem:[#allocation5 + $0x428] sm:$0xff]
        %v389 = vld [vmem:[#allocation5 + $0x430] sm:$0xff]
        %v390 = vld [vmem:[#allocation5 + $0x438] sm:$0xff]
        %v391 = vld [vmem:[#allocation5 + $0x440] sm:$0xff]
        %v392 = vld [vmem:[#allocation5 + $0x448] sm:$0xff]
        %v393 = vld [vmem:[#allocation5 + $0x450] sm:$0xff]
        %v394 = vld [vmem:[#allocation5 + $0x458] sm:$0xff]
        %v395 = vld [vmem:[#allocation5 + $0x460] sm:$0xff]
        %v396 = vld [vmem:[#allocation5 + $0x468] sm:$0xff]
        %v397 = vld [vmem:[#allocation5 + $0x470] sm:$0xff]
        %v398 = vld [vmem:[#allocation5 + $0x478] sm:$0xff]
        %v399 = vld [vmem:[#allocation5 + $0x480] sm:$0xff]
        %v400 = vld [vmem:[#allocation5 + $0x488] sm:$0xff]
        %v401 = vld [vmem:[#allocation5 + $0x490] sm:$0xff]
        %v402 = vld [vmem:[#allocation5 + $0x498] sm:$0xff]
        %v403 = vld [vmem:[#allocation5 + $0x4a0] sm:$0xff]
        %v404 = vld [vmem:[#allocation5 + $0x4a8] sm:$0xff]
        %v405 = vld [vmem:[#allocation5 + $0x4b0] sm:$0xff]
        %v406 = vld [vmem:[#allocation5 + $0x4b8] sm:$0xff]
        %v407 = vld [vmem:[#allocation5 + $0x4c0] sm:$0xff]
        %v408 = vld [vmem:[#allocation5 + $0x4c8] sm:$0xff]
        %v409 = vld [vmem:[#allocation5 + $0x4d0] sm:$0xff]
        %v410 = vld [vmem:[#allocation5 + $0x4d8] sm:$0xff]
        %v411 = vld [vmem:[#allocation5 + $0x4e0] sm:$0xff]
        %v412 = vld [vmem:[#allocation5 + $0x4e8] sm:$0xff]
        %v413 = vld [vmem:[#allocation5 + $0x4f0] sm:$0xff]
        %v414 = vld [vmem:[#allocation5 + $0x4f8] sm:$0xff]
        %v415 = vld [vmem:[#allocation5 + $0x500] sm:$0xff]
        %v416 = vld [vmem:[#allocation5 + $0x508] sm:$0xff]
        %v417 = vld [vmem:[#allocation5 + $0x510] sm:$0xff]
        %v418 = vld [vmem:[#allocation5 + $0x518] sm:$0xff]
        %v419 = vld [vmem:[#allocation5 + $0x520] sm:$0xff]
        %v420 = vld [vmem:[#allocation5 + $0x528] sm:$0xff]
        %v421 = vld [vmem:[#allocation5 + $0x530] sm:$0xff]
        %v422 = vld [vmem:[#allocation5 + $0x538] sm:$0xff]
        %v423 = vld [vmem:[#allocation5 + $0x540] sm:$0xff]
        %v424 = vld [vmem:[#allocation5 + $0x548] sm:$0xff]
        %v425 = vld [vmem:[#allocation5 + $0x550] sm:$0xff]
        %v426 = vld [vmem:[#allocation5 + $0x558] sm:$0xff]
        %v427 = vld [vmem:[#allocation5 + $0x560] sm:$0xff]
        %v428 = vld [vmem:[#allocation5 + $0x568] sm:$0xff]
        %v429 = vld [vmem:[#allocation5 + $0x570] sm:$0xff]
        %v430 = vld [vmem:[#allocation5 + $0x578] sm:$0xff]
        %v431 = vld [vmem:[#allocation5 + $0x580] sm:$0xff]
        %v432 = vld [vmem:[#allocation5 + $0x588] sm:$0xff]
        %v433 = vld [vmem:[#allocation5 + $0x590] sm:$0xff]
        %v434 = vld [vmem:[#allocation5 + $0x598] sm:$0xff]
        %v435 = vld [vmem:[#allocation5 + $0x5a0] sm:$0xff]
        %v436 = vld [vmem:[#allocation5 + $0x5a8] sm:$0xff]
        %v437 = vld [vmem:[#allocation5 + $0x5b0] sm:$0xff]
        %v438 = vld [vmem:[#allocation5 + $0x5b8] sm:$0xff]
        %v439 = vld [vmem:[#allocation5 + $0x5c0] sm:$0xff]
        %v440 = vld [vmem:[#allocation5 + $0x5c8] sm:$0xff]
        %v441 = vld [vmem:[#allocation5 + $0x5d0] sm:$0xff]
        %v442 = vld [vmem:[#allocation5 + $0x5d8] sm:$0xff]
        %v443 = vld [vmem:[#allocation5 + $0x5e0] sm:$0xff]
        %v444 = vld [vmem:[#allocation5 + $0x5e8] sm:$0xff]
        %v445 = vld [vmem:[#allocation5 + $0x5f0] sm:$0xff]
        %v446 = vld [vmem:[#allocation5 + $0x5f8] sm:$0xff]
        %v447 = vld [vmem:[#allocation5 + $0x600] sm:$0xff]
        %v448 = vld [vmem:[#allocation5 + $0x608] sm:$0xff]
        %v449 = vld [vmem:[#allocation5 + $0x610] sm:$0xff]
        %v450 = vld [vmem:[#allocation5 + $0x618] sm:$0xff]
        %v451 = vld [vmem:[#allocation5 + $0x620] sm:$0xff]
        %v452 = vld [vmem:[#allocation5 + $0x628] sm:$0xff]
        %v453 = vld [vmem:[#allocation5 + $0x630] sm:$0xff]
        %v454 = vld [vmem:[#allocation5 + $0x638] sm:$0xff]
        %v455 = vld [vmem:[#allocation5 + $0x640] sm:$0xff]
        %v456 = vld [vmem:[#allocation5 + $0x648] sm:$0xff]
        %v457 = vld [vmem:[#allocation5 + $0x650] sm:$0xff]
        %v458 = vld [vmem:[#allocation5 + $0x658] sm:$0xff]
        %v459 = vld [vmem:[#allocation5 + $0x660] sm:$0xff]
        %v460 = vld [vmem:[#allocation5 + $0x668] sm:$0xff]
        %v461 = vld [vmem:[#allocation5 + $0x670] sm:$0xff]
        %v462 = vld [vmem:[#allocation5 + $0x678] sm:$0xff]
        %v463 = vld [vmem:[#allocation5 + $0x680] sm:$0xff]
        %v464 = vld [vmem:[#allocation5 + $0x688] sm:$0xff]
        %v465 = vld [vmem:[#allocation5 + $0x690] sm:$0xff]
        %v466 = vld [vmem:[#allocation5 + $0x698] sm:$0xff]
        %v467 = vld [vmem:[#allocation5 + $0x6a0] sm:$0xff]
        %v468 = vld [vmem:[#allocation5 + $0x6a8] sm:$0xff]
        %v469 = vld [vmem:[#allocation5 + $0x6b0] sm:$0xff]
        %v470 = vld [vmem:[#allocation5 + $0x6b8] sm:$0xff]
        %v471 = vld [vmem:[#allocation5 + $0x6c0] sm:$0xff]
        %v472 = vld [vmem:[#allocation5 + $0x6c8] sm:$0xff]
        %v473 = vld [vmem:[#allocation5 + $0x6d0] sm:$0xff]
        %v474 = vld [vmem:[#allocation5 + $0x6d8] sm:$0xff]
        %v475 = vld [vmem:[#allocation5 + $0x6e0] sm:$0xff]
        %v476 = vld [vmem:[#allocation5 + $0x6e8] sm:$0xff]
        %v477 = vld [vmem:[#allocation5 + $0x6f0] sm:$0xff]
        %v478 = vld [vmem:[#allocation5 + $0x6f8] sm:$0xff]
        %v479 = vld [vmem:[#allocation5 + $0x700] sm:$0xff]
        %v480 = vld [vmem:[#allocation5 + $0x708] sm:$0xff]
        %v481 = vld [vmem:[#allocation5 + $0x710] sm:$0xff]
        %v482 = vld [vmem:[#allocation5 + $0x718] sm:$0xff]
        %v483 = vld [vmem:[#allocation5 + $0x720] sm:$0xff]
        %v484 = vld [vmem:[#allocation5 + $0x728] sm:$0xff]
        %v485 = vld [vmem:[#allocation5 + $0x730] sm:$0xff]
        %v486 = vld [vmem:[#allocation5 + $0x738] sm:$0xff]
        %v487 = vld [vmem:[#allocation5 + $0x740] sm:$0xff]
        %v488 = vld [vmem:[#allocation5 + $0x748] sm:$0xff]
        %v489 = vld [vmem:[#allocation5 + $0x750] sm:$0xff]
        %v490 = vld [vmem:[#allocation5 + $0x758] sm:$0xff]
        %v491 = vld [vmem:[#allocation5 + $0x760] sm:$0xff]
        %v492 = vld [vmem:[#allocation5 + $0x768] sm:$0xff]
        %v493 = vld [vmem:[#allocation5 + $0x770] sm:$0xff]
        %v494 = vld [vmem:[#allocation5 + $0x778] sm:$0xff]
        %v495 = vld [vmem:[#allocation5 + $0x780] sm:$0xff]
        %v496 = vld [vmem:[#allocation5 + $0x788] sm:$0xff]
        %v497 = vld [vmem:[#allocation5 + $0x790] sm:$0xff]
        %v498 = vld [vmem:[#allocation5 + $0x798] sm:$0xff]
        %v499 = vld [vmem:[#allocation5 + $0x7a0] sm:$0xff]
        %v500 = vld [vmem:[#allocation5 + $0x7a8] sm:$0xff]
        %v501 = vld [vmem:[#allocation5 + $0x7b0] sm:$0xff]
        %v502 = vld [vmem:[#allocation5 + $0x7b8] sm:$0xff]
        %v503 = vld [vmem:[#allocation5 + $0x7c0] sm:$0xff]
        %v504 = vld [vmem:[#allocation5 + $0x7c8] sm:$0xff]
        %v505 = vld [vmem:[#allocation5 + $0x7d0] sm:$0xff]
        %v506 = vld [vmem:[#allocation5 + $0x7d8] sm:$0xff]
        %v507 = vld [vmem:[#allocation5 + $0x7e0] sm:$0xff]
        %v508 = vld [vmem:[#allocation5 + $0x7e8] sm:$0xff]
        %v509 = vld [vmem:[#allocation5 + $0x7f0] sm:$0xff]
        %v510 = vld [vmem:[#allocation5 + $0x7f8] sm:$0xff]
        %511 = vmatpush.msra.mxu0 %v375
        %512 = vmatpush.msra.mxu0 %v367
        %513 = vmatpush.msra.mxu0 %v359
        %514 = vmatpush.msra.mxu0 %v351
        %515 = vmatpush.msra.mxu0 %v343
        %516 = vmatpush.msra.mxu0 %v335
        %517 = vmatpush.msra.mxu0 %v327
        %518 = vmatpush.msra.mxu0 %v319
        %519 = vmatpush.msra.mxu0 %v311
        %520 = vmatpush.msra.mxu0 %v303
        %521 = vmatpush.msra.mxu0 %v295
        %522 = vmatpush.msra.mxu0 %v287
        %523 = vmatpush.msra.mxu0 %v279
        %524 = vmatpush.msra.mxu0 %v271
        %525 = vmatpush.msra.mxu0 %v263
        %526 = vmatpush.msra.mxu0 %v255
        %527 = vmatmul.f32.gmra.mxu0 %v251
        %v528 = vpop.f32.mrf.mxu0
        %v529 = vadd.f32 0.0, %v528
        %530 = vmatmul.f32.gmra.mxu0 %v253
        %v531 = vpop.f32.mrf.mxu0
        %v532 = vadd.f32 0.0, %v531
        %533 = vdwg.mxu0
        %534 = vmatpush.msra.mxu0 %v503
        %535 = vmatpush.msra.mxu0 %v495
        %536 = vmatpush.msra.mxu0 %v487
        %537 = vmatpush.msra.mxu0 %v479
        %538 = vmatpush.msra.mxu0 %v471
        %539 = vmatpush.msra.mxu0 %v463
        %540 = vmatpush.msra.mxu0 %v455
        %541 = vmatpush.msra.mxu0 %v447
        %542 = vmatpush.msra.mxu0 %v439
        %543 = vmatpush.msra.mxu0 %v431
        %544 = vmatpush.msra.mxu0 %v423
        %545 = vmatpush.msra.mxu0 %v415
        %546 = vmatpush.msra.mxu0 %v407
        %547 = vmatpush.msra.mxu0 %v399
        %548 = vmatpush.msra.mxu0 %v391
        %549 = vmatpush.msra.mxu0 %v383
        %550 = vmatmul.f32.gmra.mxu0 %v252
        %v551 = vpop.f32.mrf.mxu0
        %v552 = vadd.f32 %v529, %v551
        %553 = vmatmul.f32.gmra.mxu0 %v254
        %v554 = vpop.f32.mrf.mxu0
        %v555 = vadd.f32 %v532, %v554
        %556 = vdwg.mxu0
        %557 = vmatpush.msra.mxu0 %v376
        %558 = vmatpush.msra.mxu0 %v368
        %559 = vmatpush.msra.mxu0 %v360
        %560 = vmatpush.msra.mxu0 %v352
        %561 = vmatpush.msra.mxu0 %v344
        %562 = vmatpush.msra.mxu0 %v336
        %563 = vmatpush.msra.mxu0 %v328
        %564 = vmatpush.msra.mxu0 %v320
        %565 = vmatpush.msra.mxu0 %v312
        %566 = vmatpush.msra.mxu0 %v304
        %567 = vmatpush.msra.mxu0 %v296
        %568 = vmatpush.msra.mxu0 %v288
        %569 = vmatpush.msra.mxu0 %v280
        %570 = vmatpush.msra.mxu0 %v272
        %571 = vmatpush.msra.mxu0 %v264
        %572 = vmatpush.msra.mxu0 %v256
        %573 = vmatmul.f32.gmra.mxu0 %v251
        %v574 = vpop.f32.mrf.mxu0
        %v575 = vadd.f32 0.0, %v574
        %576 = vmatmul.f32.gmra.mxu0 %v253
        %v577 = vpop.f32.mrf.mxu0
        %v578 = vadd.f32 0.0, %v577
        %579 = vdwg.mxu0
        %580 = vmatpush.msra.mxu0 %v504
        %581 = vmatpush.msra.mxu0 %v496
        %582 = vmatpush.msra.mxu0 %v488
        %583 = vmatpush.msra.mxu0 %v480
        %584 = vmatpush.msra.mxu0 %v472
        %585 = vmatpush.msra.mxu0 %v464
        %586 = vmatpush.msra.mxu0 %v456
        %587 = vmatpush.msra.mxu0 %v448
        %588 = vmatpush.msra.mxu0 %v440
        %589 = vmatpush.msra.mxu0 %v432
        %590 = vmatpush.msra.mxu0 %v424
        %591 = vmatpush.msra.mxu0 %v416
        %592 = vmatpush.msra.mxu0 %v408
        %593 = vmatpush.msra.mxu0 %v400
        %594 = vmatpush.msra.mxu0 %v392
        %595 = vmatpush.msra.mxu0 %v384
        %596 = vmatmul.f32.gmra.mxu0 %v252
        %v597 = vpop.f32.mrf.mxu0
        %v598 = vadd.f32 %v575, %v597
        %599 = vmatmul.f32.gmra.mxu0 %v254
        %v600 = vpop.f32.mrf.mxu0
        %v601 = vadd.f32 %v578, %v600
        %602 = vdwg.mxu0
        %603 = vmatpush.msra.mxu0 %v377
        %604 = vmatpush.msra.mxu0 %v369
        %605 = vmatpush.msra.mxu0 %v361
        %606 = vmatpush.msra.mxu0 %v353
        %607 = vmatpush.msra.mxu0 %v345
        %608 = vmatpush.msra.mxu0 %v337
        %609 = vmatpush.msra.mxu0 %v329
        %610 = vmatpush.msra.mxu0 %v321
        %611 = vmatpush.msra.mxu0 %v313
        %612 = vmatpush.msra.mxu0 %v305
        %613 = vmatpush.msra.mxu0 %v297
        %614 = vmatpush.msra.mxu0 %v289
        %615 = vmatpush.msra.mxu0 %v281
        %616 = vmatpush.msra.mxu0 %v273
        %617 = vmatpush.msra.mxu0 %v265
        %618 = vmatpush.msra.mxu0 %v257
        %619 = vmatmul.f32.gmra.mxu0 %v251
        %v620 = vpop.f32.mrf.mxu0
        %v621 = vadd.f32 0.0, %v620
        %622 = vmatmul.f32.gmra.mxu0 %v253
        %v623 = vpop.f32.mrf.mxu0
        %v624 = vadd.f32 0.0, %v623
        %625 = vdwg.mxu0
        %626 = vmatpush.msra.mxu0 %v505
        %627 = vmatpush.msra.mxu0 %v497
        %628 = vmatpush.msra.mxu0 %v489
        %629 = vmatpush.msra.mxu0 %v481
        %630 = vmatpush.msra.mxu0 %v473
        %631 = vmatpush.msra.mxu0 %v465
        %632 = vmatpush.msra.mxu0 %v457
        %633 = vmatpush.msra.mxu0 %v449
        %634 = vmatpush.msra.mxu0 %v441
        %635 = vmatpush.msra.mxu0 %v433
        %636 = vmatpush.msra.mxu0 %v425
        %637 = vmatpush.msra.mxu0 %v417
        %638 = vmatpush.msra.mxu0 %v409
        %639 = vmatpush.msra.mxu0 %v401
        %640 = vmatpush.msra.mxu0 %v393
        %641 = vmatpush.msra.mxu0 %v385
        %642 = vmatmul.f32.gmra.mxu0 %v252
        %v643 = vpop.f32.mrf.mxu0
        %v644 = vadd.f32 %v621, %v643
        %645 = vmatmul.f32.gmra.mxu0 %v254
        %v646 = vpop.f32.mrf.mxu0
        %v647 = vadd.f32 %v624, %v646
        %648 = vdwg.mxu0
        %649 = vmatpush.msra.mxu0 %v378
        %650 = vmatpush.msra.mxu0 %v370
        %651 = vmatpush.msra.mxu0 %v362
        %652 = vmatpush.msra.mxu0 %v354
        %653 = vmatpush.msra.mxu0 %v346
        %654 = vmatpush.msra.mxu0 %v338
        %655 = vmatpush.msra.mxu0 %v330
        %656 = vmatpush.msra.mxu0 %v322
        %657 = vmatpush.msra.mxu0 %v314
        %658 = vmatpush.msra.mxu0 %v306
        %659 = vmatpush.msra.mxu0 %v298
        %660 = vmatpush.msra.mxu0 %v290
        %661 = vmatpush.msra.mxu0 %v282
        %662 = vmatpush.msra.mxu0 %v274
        %663 = vmatpush.msra.mxu0 %v266
        %664 = vmatpush.msra.mxu0 %v258
        %665 = vmatmul.f32.gmra.mxu0 %v251
        %v666 = vpop.f32.mrf.mxu0
        %v667 = vadd.f32 0.0, %v666
        %668 = vmatmul.f32.gmra.mxu0 %v253
        %v669 = vpop.f32.mrf.mxu0
        %v670 = vadd.f32 0.0, %v669
        %671 = vdwg.mxu0
        %672 = vmatpush.msra.mxu0 %v506
        %673 = vmatpush.msra.mxu0 %v498
        %674 = vmatpush.msra.mxu0 %v490
        %675 = vmatpush.msra.mxu0 %v482
        %676 = vmatpush.msra.mxu0 %v474
        %677 = vmatpush.msra.mxu0 %v466
        %678 = vmatpush.msra.mxu0 %v458
        %679 = vmatpush.msra.mxu0 %v450
        %680 = vmatpush.msra.mxu0 %v442
        %681 = vmatpush.msra.mxu0 %v434
        %682 = vmatpush.msra.mxu0 %v426
        %683 = vmatpush.msra.mxu0 %v418
        %684 = vmatpush.msra.mxu0 %v410
        %685 = vmatpush.msra.mxu0 %v402
        %686 = vmatpush.msra.mxu0 %v394
        %687 = vmatpush.msra.mxu0 %v386
        %688 = vmatmul.f32.gmra.mxu0 %v252
        %v689 = vpop.f32.mrf.mxu0
        %v690 = vadd.f32 %v667, %v689
        %691 = vmatmul.f32.gmra.mxu0 %v254
        %v692 = vpop.f32.mrf.mxu0
        %v693 = vadd.f32 %v670, %v692
        %694 = vdwg.mxu0
        %695 = vmatpush.msra.mxu0 %v379
        %696 = vmatpush.msra.mxu0 %v371
        %697 = vmatpush.msra.mxu0 %v363
        %698 = vmatpush.msra.mxu0 %v355
        %699 = vmatpush.msra.mxu0 %v347
        %700 = vmatpush.msra.mxu0 %v339
        %701 = vmatpush.msra.mxu0 %v331
        %702 = vmatpush.msra.mxu0 %v323
        %703 = vmatpush.msra.mxu0 %v315
        %704 = vmatpush.msra.mxu0 %v307
        %705 = vmatpush.msra.mxu0 %v299
        %706 = vmatpush.msra.mxu0 %v291
        %707 = vmatpush.msra.mxu0 %v283
        %708 = vmatpush.msra.mxu0 %v275
        %709 = vmatpush.msra.mxu0 %v267
        %710 = vmatpush.msra.mxu0 %v259
        %711 = vmatmul.f32.gmra.mxu0 %v251
        %v712 = vpop.f32.mrf.mxu0
        %v713 = vadd.f32 0.0, %v712
        %714 = vmatmul.f32.gmra.mxu0 %v253
        %v715 = vpop.f32.mrf.mxu0
        %v716 = vadd.f32 0.0, %v715
        %717 = vdwg.mxu0
        %718 = vmatpush.msra.mxu0 %v507
        %719 = vmatpush.msra.mxu0 %v499
        %720 = vmatpush.msra.mxu0 %v491
        %721 = vmatpush.msra.mxu0 %v483
        %722 = vmatpush.msra.mxu0 %v475
        %723 = vmatpush.msra.mxu0 %v467
        %724 = vmatpush.msra.mxu0 %v459
        %725 = vmatpush.msra.mxu0 %v451
        %726 = vmatpush.msra.mxu0 %v443
        %727 = vmatpush.msra.mxu0 %v435
        %728 = vmatpush.msra.mxu0 %v427
        %729 = vmatpush.msra.mxu0 %v419
        %730 = vmatpush.msra.mxu0 %v411
        %731 = vmatpush.msra.mxu0 %v403
        %732 = vmatpush.msra.mxu0 %v395
        %733 = vmatpush.msra.mxu0 %v387
        %734 = vmatmul.f32.gmra.mxu0 %v252
        %v735 = vpop.f32.mrf.mxu0
        %v736 = vadd.f32 %v713, %v735
        %737 = vmatmul.f32.gmra.mxu0 %v254
        %v738 = vpop.f32.mrf.mxu0
        %v739 = vadd.f32 %v716, %v738
        %740 = vdwg.mxu0
        %741 = vmatpush.msra.mxu0 %v380
        %742 = vmatpush.msra.mxu0 %v372
        %743 = vmatpush.msra.mxu0 %v364
        %744 = vmatpush.msra.mxu0 %v356
        %745 = vmatpush.msra.mxu0 %v348
        %746 = vmatpush.msra.mxu0 %v340
        %747 = vmatpush.msra.mxu0 %v332
        %748 = vmatpush.msra.mxu0 %v324
        %749 = vmatpush.msra.mxu0 %v316
        %750 = vmatpush.msra.mxu0 %v308
        %751 = vmatpush.msra.mxu0 %v300
        %752 = vmatpush.msra.mxu0 %v292
        %753 = vmatpush.msra.mxu0 %v284
        %754 = vmatpush.msra.mxu0 %v276
        %755 = vmatpush.msra.mxu0 %v268
        %756 = vmatpush.msra.mxu0 %v260
        %757 = vmatmul.f32.gmra.mxu0 %v251
        %v758 = vpop.f32.mrf.mxu0
        %v759 = vadd.f32 0.0, %v758
        %760 = vmatmul.f32.gmra.mxu0 %v253
        %v761 = vpop.f32.mrf.mxu0
        %v762 = vadd.f32 0.0, %v761
        %763 = vdwg.mxu0
        %764 = vmatpush.msra.mxu0 %v508
        %765 = vmatpush.msra.mxu0 %v500
        %766 = vmatpush.msra.mxu0 %v492
        %767 = vmatpush.msra.mxu0 %v484
        %768 = vmatpush.msra.mxu0 %v476
        %769 = vmatpush.msra.mxu0 %v468
        %770 = vmatpush.msra.mxu0 %v460
        %771 = vmatpush.msra.mxu0 %v452
        %772 = vmatpush.msra.mxu0 %v444
        %773 = vmatpush.msra.mxu0 %v436
        %774 = vmatpush.msra.mxu0 %v428
        %775 = vmatpush.msra.mxu0 %v420
        %776 = vmatpush.msra.mxu0 %v412
        %777 = vmatpush.msra.mxu0 %v404
        %778 = vmatpush.msra.mxu0 %v396
        %779 = vmatpush.msra.mxu0 %v388
        %780 = vmatmul.f32.gmra.mxu0 %v252
        %v781 = vpop.f32.mrf.mxu0
        %v782 = vadd.f32 %v759, %v781
        %783 = vmatmul.f32.gmra.mxu0 %v254
        %v784 = vpop.f32.mrf.mxu0
        %v785 = vadd.f32 %v762, %v784
        %786 = vdwg.mxu0
        %787 = vmatpush.msra.mxu0 %v381
        %788 = vmatpush.msra.mxu0 %v373
        %789 = vmatpush.msra.mxu0 %v365
        %790 = vmatpush.msra.mxu0 %v357
        %791 = vmatpush.msra.mxu0 %v349
        %792 = vmatpush.msra.mxu0 %v341
        %793 = vmatpush.msra.mxu0 %v333
        %794 = vmatpush.msra.mxu0 %v325
        %795 = vmatpush.msra.mxu0 %v317
        %796 = vmatpush.msra.mxu0 %v309
        %797 = vmatpush.msra.mxu0 %v301
        %798 = vmatpush.msra.mxu0 %v293
        %799 = vmatpush.msra.mxu0 %v285
        %800 = vmatpush.msra.mxu0 %v277
        %801 = vmatpush.msra.mxu0 %v269
        %802 = vmatpush.msra.mxu0 %v261
        %803 = vmatmul.f32.gmra.mxu0 %v251
        %v804 = vpop.f32.mrf.mxu0
        %v805 = vadd.f32 0.0, %v804
        %806 = vmatmul.f32.gmra.mxu0 %v253
        %v807 = vpop.f32.mrf.mxu0
        %v808 = vadd.f32 0.0, %v807
        %809 = vdwg.mxu0
        %810 = vmatpush.msra.mxu0 %v509
        %811 = vmatpush.msra.mxu0 %v501
        %812 = vmatpush.msra.mxu0 %v493
        %813 = vmatpush.msra.mxu0 %v485
        %814 = vmatpush.msra.mxu0 %v477
        %815 = vmatpush.msra.mxu0 %v469
        %816 = vmatpush.msra.mxu0 %v461
        %817 = vmatpush.msra.mxu0 %v453
        %818 = vmatpush.msra.mxu0 %v445
        %819 = vmatpush.msra.mxu0 %v437
        %820 = vmatpush.msra.mxu0 %v429
        %821 = vmatpush.msra.mxu0 %v421
        %822 = vmatpush.msra.mxu0 %v413
        %823 = vmatpush.msra.mxu0 %v405
        %824 = vmatpush.msra.mxu0 %v397
        %825 = vmatpush.msra.mxu0 %v389
        %826 = vmatmul.f32.gmra.mxu0 %v252
        %v827 = vpop.f32.mrf.mxu0
        %v828 = vadd.f32 %v805, %v827
        %829 = vmatmul.f32.gmra.mxu0 %v254
        %v830 = vpop.f32.mrf.mxu0
        %v831 = vadd.f32 %v808, %v830
        %832 = vdwg.mxu0
        %833 = vmatpush.msra.mxu0 %v382
        %834 = vmatpush.msra.mxu0 %v374
        %835 = vmatpush.msra.mxu0 %v366
        %836 = vmatpush.msra.mxu0 %v358
        %837 = vmatpush.msra.mxu0 %v350
        %838 = vmatpush.msra.mxu0 %v342
        %839 = vmatpush.msra.mxu0 %v334
        %840 = vmatpush.msra.mxu0 %v326
        %841 = vmatpush.msra.mxu0 %v318
        %842 = vmatpush.msra.mxu0 %v310
        %843 = vmatpush.msra.mxu0 %v302
        %844 = vmatpush.msra.mxu0 %v294
        %845 = vmatpush.msra.mxu0 %v286
        %846 = vmatpush.msra.mxu0 %v278
        %847 = vmatpush.msra.mxu0 %v270
        %848 = vmatpush.msra.mxu0 %v262
        %849 = vmatmul.f32.gmra.mxu0 %v251
        %v850 = vpop.f32.mrf.mxu0
        %v851 = vadd.f32 0.0, %v850
        %852 = vmatmul.f32.gmra.mxu0 %v253
        %v853 = vpop.f32.mrf.mxu0
        %v854 = vadd.f32 0.0, %v853
        %855 = vdwg.mxu0
        %856 = vmatpush.msra.mxu0 %v510
        %857 = vmatpush.msra.mxu0 %v502
        %858 = vmatpush.msra.mxu0 %v494
        %859 = vmatpush.msra.mxu0 %v486
        %860 = vmatpush.msra.mxu0 %v478
        %861 = vmatpush.msra.mxu0 %v470
        %862 = vmatpush.msra.mxu0 %v462
        %863 = vmatpush.msra.mxu0 %v454
        %864 = vmatpush.msra.mxu0 %v446
        %865 = vmatpush.msra.mxu0 %v438
        %866 = vmatpush.msra.mxu0 %v430
        %867 = vmatpush.msra.mxu0 %v422
        %868 = vmatpush.msra.mxu0 %v414
        %869 = vmatpush.msra.mxu0 %v406
        %870 = vmatpush.msra.mxu0 %v398
        %871 = vmatpush.msra.mxu0 %v390
        %872 = vmatmul.f32.gmra.mxu0 %v252
        %v873 = vpop.f32.mrf.mxu0
        %v874 = vadd.f32 %v851, %v873
        %875 = vmatmul.f32.gmra.mxu0 %v254
        %v876 = vpop.f32.mrf.mxu0
        %v877 = vadd.f32 %v854, %v876
        %878 = vdwg.mxu0
        %v879 = vlaneseq
        %v880 = vand.u32 %v879, 127
        %v881 = vadd.s32 %v880, 128
        %v882 = vadd.s32 %v880, 256
        %v883 = vadd.s32 %v880, 384
        %v884 = vadd.s32 %v880, 512
        %v885 = vadd.s32 %v880, 640
        %v886 = vadd.s32 %v880, 768
        %v887 = vadd.s32 %v880, 896
        %vm888 = vcmp.lt.s32.totalorder %v880, 0
        %v889 = vsub.s32 0, %v880
        %v890 = vsel %vm888, %v889, %v880
        %v891 = vshrl.u32 %v890, 5
        %v892 = vand.u32 %v890, 31
        %v893 = vsub.s32 0, %v892
        %v894 = vsel %vm888, %v893, %v892
        %vm895 = vcmp.lt.s32.totalorder %v881, 0
        %v896 = vsub.s32 0, %v881
        %v897 = vsel %vm895, %v896, %v881
        %v898 = vshrl.u32 %v897, 5
        %v899 = vand.u32 %v897, 31
        %v900 = vsub.s32 0, %v899
        %v901 = vsel %vm895, %v900, %v899
        %vm902 = vcmp.lt.s32.totalorder %v882, 0
        %v903 = vsub.s32 0, %v882
        %v904 = vsel %vm902, %v903, %v882
        %v905 = vshrl.u32 %v904, 5
        %v906 = vand.u32 %v904, 31
        %v907 = vsub.s32 0, %v906
        %v908 = vsel %vm902, %v907, %v906
        %vm909 = vcmp.lt.s32.totalorder %v883, 0
        %v910 = vsub.s32 0, %v883
        %v911 = vsel %vm909, %v910, %v883
        %v912 = vshrl.u32 %v911, 5
        %v913 = vand.u32 %v911, 31
        %v914 = vsub.s32 0, %v913
        %v915 = vsel %vm909, %v914, %v913
        %vm916 = vcmp.lt.s32.totalorder %v884, 0
        %v917 = vsub.s32 0, %v884
        %v918 = vsel %vm916, %v917, %v884
        %v919 = vshrl.u32 %v918, 5
        %v920 = vand.u32 %v918, 31
        %v921 = vsub.s32 0, %v920
        %v922 = vsel %vm916, %v921, %v920
        %vm923 = vcmp.lt.s32.totalorder %v885, 0
        %v924 = vsub.s32 0, %v885
        %v925 = vsel %vm923, %v924, %v885
        %v926 = vshrl.u32 %v925, 5
        %v927 = vand.u32 %v925, 31
        %v928 = vsub.s32 0, %v927
        %v929 = vsel %vm923, %v928, %v927
        %vm930 = vcmp.lt.s32.totalorder %v886, 0
        %v931 = vsub.s32 0, %v886
        %v932 = vsel %vm930, %v931, %v886
        %v933 = vshrl.u32 %v932, 5
        %v934 = vand.u32 %v932, 31
        %v935 = vsub.s32 0, %v934
        %v936 = vsel %vm930, %v935, %v934
        %vm937 = vcmp.lt.s32.totalorder %v887, 0
        %v938 = vsub.s32 0, %v887
        %v939 = vsel %vm937, %v938, %v887
        %v940 = vshrl.u32 %v939, 5
        %v941 = vand.u32 %v939, 31
        %v942 = vsub.s32 0, %v941
        %v943 = vsel %vm937, %v942, %v941
        %vm944 = vcmp.ne.s32.totalorder %v894, 0
        %vm945 = vcmp.ne.s32.totalorder %v901, 0
        %vm946 = vcmp.ne.s32.totalorder %v908, 0
        %vm947 = vcmp.ne.s32.totalorder %v915, 0
        %vm948 = vcmp.ne.s32.totalorder %v922, 0
        %vm949 = vcmp.ne.s32.totalorder %v929, 0
        %vm950 = vcmp.ne.s32.totalorder %v936, 0
        %vm951 = vcmp.ne.s32.totalorder %v943, 0
        %vm952 = vcmp.lt.s32.totalorder %v894, 0
        %vm953 = vcmp.lt.s32.totalorder %v901, 0
        %vm954 = vcmp.lt.s32.totalorder %v908, 0
        %vm955 = vcmp.lt.s32.totalorder %v915, 0
        %vm956 = vcmp.lt.s32.totalorder %v922, 0
        %vm957 = vcmp.lt.s32.totalorder %v929, 0
        %vm958 = vcmp.lt.s32.totalorder %v936, 0
        %vm959 = vcmp.lt.s32.totalorder %v943, 0
        %vm960 = vmand %vm952, %vm944
        %vm961 = vmand %vm953, %vm945
        %vm962 = vmand %vm954, %vm946
        %vm963 = vmand %vm955, %vm947
        %vm964 = vmand %vm956, %vm948
        %vm965 = vmand %vm957, %vm949
        %vm966 = vmand %vm958, %vm950
        %vm967 = vmand %vm959, %vm951
        %v968 = vadd.s32 %v894, 32
        %v969 = vadd.s32 %v901, 32
        %v970 = vadd.s32 %v908, 32
        %v971 = vadd.s32 %v915, 32
        %v972 = vadd.s32 %v922, 32
        %v973 = vadd.s32 %v929, 32
        %v974 = vadd.s32 %v936, 32
        %v975 = vadd.s32 %v943, 32
        %v976 = vsel %vm960, %v968, %v894
        %v977 = vsel %vm961, %v969, %v901
        %v978 = vsel %vm962, %v970, %v908
        %v979 = vsel %vm963, %v971, %v915
        %v980 = vsel %vm964, %v972, %v922
        %v981 = vsel %vm965, %v973, %v929
        %v982 = vsel %vm966, %v974, %v936
        %v983 = vsel %vm967, %v975, %v943
        %1000 = vrot.lane.b32.xlu0 %v552, 33
        %v1001 = vpop.permute.xlu0 %1000
        %1002 = vrot.lane.b32.xlu0 %v598, 33
        %v1003 = vpop.permute.xlu0 %1002
        %1004 = vrot.lane.b32.xlu0 %v644, 33
        %v1005 = vpop.permute.xlu0 %1004
        %1006 = vrot.lane.b32.xlu0 %v690, 33
        %v1007 = vpop.permute.xlu0 %1006
        %1008 = vrot.lane.b32.xlu0 %v736, 33
        %v1009 = vpop.permute.xlu0 %1008
        %1010 = vrot.lane.b32.xlu0 %v782, 33
        %v1011 = vpop.permute.xlu0 %1010
        %1012 = vrot.lane.b32.xlu0 %v828, 33
        %v1013 = vpop.permute.xlu0 %1012
        %1014 = vrot.lane.b32.xlu0 %v874, 33
        %v1015 = vpop.permute.xlu0 %1014
        %1016 = vrot.lane.b32.xlu0 %v555, 33
        %v1017 = vpop.permute.xlu0 %1016
        %1018 = vrot.lane.b32.xlu0 %v601, 33
        %v1019 = vpop.permute.xlu0 %1018
        %1020 = vrot.lane.b32.xlu0 %v647, 33
        %v1021 = vpop.permute.xlu0 %1020
        %1022 = vrot.lane.b32.xlu0 %v693, 33
        %v1023 = vpop.permute.xlu0 %1022
        %1024 = vrot.lane.b32.xlu0 %v739, 33
        %v1025 = vpop.permute.xlu0 %1024
        %1026 = vrot.lane.b32.xlu0 %v785, 33
        %v1027 = vpop.permute.xlu0 %1026
        %1028 = vrot.lane.b32.xlu0 %v831, 33
        %v1029 = vpop.permute.xlu0 %1028
        %1030 = vrot.lane.b32.xlu0 %v877, 33
        %v1031 = vpop.permute.xlu0 %1030
        %vm1032 = vcmask 269312
        %v1033 = vsel %vm1032, %v1001, %v1003
        %v1034 = vsel %vm1032, %v1003, %v1005
        %v1035 = vsel %vm1032, %v1005, %v1007
        %v1036 = vsel %vm1032, %v1007, %v1009
        %v1037 = vsel %vm1032, %v1009, %v1011
        %v1038 = vsel %vm1032, %v1011, %v1013
        %v1039 = vsel %vm1032, %v1013, %v1015
        %v1040 = vsel %vm1032, %v1017, %v1019
        %v1041 = vsel %vm1032, %v1019, %v1021
        %v1042 = vsel %vm1032, %v1021, %v1023
        %v1043 = vsel %vm1032, %v1023, %v1025
        %v1044 = vsel %vm1032, %v1025, %v1027
        %v1045 = vsel %vm1032, %v1027, %v1029
        %v1046 = vsel %vm1032, %v1029, %v1031
        %v1063 = vsel %vm1032, 0.0, %v1001
        %v1064 = vsel %vm1032, 0.0, %v1017
        %vm1065 = vcmp.ge.s32.totalorder %v976, 1
        %vm1066 = vcmp.ge.s32.totalorder %v977, 1
        %vm1067 = vcmp.ge.s32.totalorder %v978, 1
        %vm1068 = vcmp.ge.s32.totalorder %v979, 1
        %vm1069 = vcmp.ge.s32.totalorder %v980, 1
        %vm1070 = vcmp.ge.s32.totalorder %v981, 1
        %vm1071 = vcmp.ge.s32.totalorder %v982, 1
        %vm1072 = vcmp.ge.s32.totalorder %v983, 1
        %v1073 = vsel %vm1065, %v1063, 0.0
        %v1074 = vsel %vm1066, %v1033, 0.0
        %v1075 = vsel %vm1067, %v1034, 0.0
        %v1076 = vsel %vm1068, %v1035, 0.0
        %v1077 = vsel %vm1069, %v1036, 0.0
        %v1078 = vsel %vm1070, %v1037, 0.0
        %v1079 = vsel %vm1071, %v1038, 0.0
        %v1080 = vsel %vm1072, %v1039, 0.0
        %v1081 = vsel %vm1065, %v1064, 0.0
        %v1082 = vsel %vm1066, %v1040, 0.0
        %v1083 = vsel %vm1067, %v1041, 0.0
        %v1084 = vsel %vm1068, %v1042, 0.0
        %v1085 = vsel %vm1069, %v1043, 0.0
        %v1086 = vsel %vm1070, %v1044, 0.0
        %v1087 = vsel %vm1071, %v1045, 0.0
        %v1088 = vsel %vm1072, %v1046, 0.0
        %1089 = vrot.lane.b32.xlu0 %v552, 32
        %v1090 = vpop.permute.xlu0 %1089
        %1091 = vrot.lane.b32.xlu0 %v598, 32
        %v1092 = vpop.permute.xlu0 %1091
        %1093 = vrot.lane.b32.xlu0 %v644, 32
        %v1094 = vpop.permute.xlu0 %1093
        %1095 = vrot.lane.b32.xlu0 %v690, 32
        %v1096 = vpop.permute.xlu0 %1095
        %1097 = vrot.lane.b32.xlu0 %v736, 32
        %v1098 = vpop.permute.xlu0 %1097
        %1099 = vrot.lane.b32.xlu0 %v782, 32
        %v1100 = vpop.permute.xlu0 %1099
        %1101 = vrot.lane.b32.xlu0 %v828, 32
        %v1102 = vpop.permute.xlu0 %1101
        %1103 = vrot.lane.b32.xlu0 %v874, 32
        %v1104 = vpop.permute.xlu0 %1103
        %1105 = vrot.lane.b32.xlu0 %v555, 32
        %v1106 = vpop.permute.xlu0 %1105
        %1107 = vrot.lane.b32.xlu0 %v601, 32
        %v1108 = vpop.permute.xlu0 %1107
        %1109 = vrot.lane.b32.xlu0 %v647, 32
        %v1110 = vpop.permute.xlu0 %1109
        %1111 = vrot.lane.b32.xlu0 %v693, 32
        %v1112 = vpop.permute.xlu0 %1111
        %1113 = vrot.lane.b32.xlu0 %v739, 32
        %v1114 = vpop.permute.xlu0 %1113
        %1115 = vrot.lane.b32.xlu0 %v785, 32
        %v1116 = vpop.permute.xlu0 %1115
        %1117 = vrot.lane.b32.xlu0 %v831, 32
        %v1118 = vpop.permute.xlu0 %1117
        %1119 = vrot.lane.b32.xlu0 %v877, 32
        %v1120 = vpop.permute.xlu0 %1119
        %vm1121 = vcmask 261120
        %v1122 = vsel %vm1121, %v1090, %v1092
        %v1123 = vsel %vm1121, %v1092, %v1094
        %v1124 = vsel %vm1121, %v1094, %v1096
        %v1125 = vsel %vm1121, %v1096, %v1098
        %v1126 = vsel %vm1121, %v1098, %v1100
        %v1127 = vsel %vm1121, %v1100, %v1102
        %v1128 = vsel %vm1121, %v1102, %v1104
        %v1129 = vsel %vm1121, %v1106, %v1108
        %v1130 = vsel %vm1121, %v1108, %v1110
        %v1131 = vsel %vm1121, %v1110, %v1112
        %v1132 = vsel %vm1121, %v1112, %v1114
        %v1133 = vsel %vm1121, %v1114, %v1116
        %v1134 = vsel %vm1121, %v1116, %v1118
        %v1135 = vsel %vm1121, %v1118, %v1120
        %v1152 = vsel %vm1121, 0.0, %v1090
        %v1153 = vsel %vm1121, 0.0, %v1106
        %1154 = vrot.lane.b32.xlu0 %v552, 31
        %v1155 = vpop.permute.xlu0 %1154
        %1156 = vrot.lane.b32.xlu0 %v598, 31
        %v1157 = vpop.permute.xlu0 %1156
        %1158 = vrot.lane.b32.xlu0 %v644, 31
        %v1159 = vpop.permute.xlu0 %1158
        %1160 = vrot.lane.b32.xlu0 %v690, 31
        %v1161 = vpop.permute.xlu0 %1160
        %1162 = vrot.lane.b32.xlu0 %v736, 31
        %v1163 = vpop.permute.xlu0 %1162
        %1164 = vrot.lane.b32.xlu0 %v782, 31
        %v1165 = vpop.permute.xlu0 %1164
        %1166 = vrot.lane.b32.xlu0 %v828, 31
        %v1167 = vpop.permute.xlu0 %1166
        %1168 = vrot.lane.b32.xlu0 %v874, 31
        %v1169 = vpop.permute.xlu0 %1168
        %1170 = vrot.lane.b32.xlu0 %v555, 31
        %v1171 = vpop.permute.xlu0 %1170
        %1172 = vrot.lane.b32.xlu0 %v601, 31
        %v1173 = vpop.permute.xlu0 %1172
        %1174 = vrot.lane.b32.xlu0 %v647, 31
        %v1175 = vpop.permute.xlu0 %1174
        %1176 = vrot.lane.b32.xlu0 %v693, 31
        %v1177 = vpop.permute.xlu0 %1176
        %1178 = vrot.lane.b32.xlu0 %v739, 31
        %v1179 = vpop.permute.xlu0 %1178
        %1180 = vrot.lane.b32.xlu0 %v785, 31
        %v1181 = vpop.permute.xlu0 %1180
        %1182 = vrot.lane.b32.xlu0 %v831, 31
        %v1183 = vpop.permute.xlu0 %1182
        %1184 = vrot.lane.b32.xlu0 %v877, 31
        %v1185 = vpop.permute.xlu0 %1184
        %vm1186 = vcmask 252928
        %v1187 = vsel %vm1186, %v1155, %v1157
        %v1188 = vsel %vm1186, %v1157, %v1159
        %v1189 = vsel %vm1186, %v1159, %v1161
        %v1190 = vsel %vm1186, %v1161, %v1163
        %v1191 = vsel %vm1186, %v1163, %v1165
        %v1192 = vsel %vm1186, %v1165, %v1167
        %v1193 = vsel %vm1186, %v1167, %v1169
        %v1194 = vsel %vm1186, %v1171, %v1173
        %v1195 = vsel %vm1186, %v1173, %v1175
        %v1196 = vsel %vm1186, %v1175, %v1177
        %v1197 = vsel %vm1186, %v1177, %v1179
        %v1198 = vsel %vm1186, %v1179, %v1181
        %v1199 = vsel %vm1186, %v1181, %v1183
        %v1200 = vsel %vm1186, %v1183, %v1185
        %v1217 = vsel %vm1186, 0.0, %v1155
        %v1218 = vsel %vm1186, 0.0, %v1171
        %vm1219 = vcmp.lt.s32.totalorder %v976, 31
        %vm1220 = vcmp.lt.s32.totalorder %v977, 31
        %vm1221 = vcmp.lt.s32.totalorder %v978, 31
        %vm1222 = vcmp.lt.s32.totalorder %v979, 31
        %vm1223 = vcmp.lt.s32.totalorder %v980, 31
        %vm1224 = vcmp.lt.s32.totalorder %v981, 31
        %vm1225 = vcmp.lt.s32.totalorder %v982, 31
        %vm1226 = vcmp.lt.s32.totalorder %v983, 31
        %v1227 = vsel %vm1219, %v1217, 0.0
        %v1228 = vsel %vm1220, %v1187, 0.0
        %v1229 = vsel %vm1221, %v1188, 0.0
        %v1230 = vsel %vm1222, %v1189, 0.0
        %v1231 = vsel %vm1223, %v1190, 0.0
        %v1232 = vsel %vm1224, %v1191, 0.0
        %v1233 = vsel %vm1225, %v1192, 0.0
        %v1234 = vsel %vm1226, %v1193, 0.0
        %v1235 = vsel %vm1219, %v1218, 0.0
        %v1236 = vsel %vm1220, %v1194, 0.0
        %v1237 = vsel %vm1221, %v1195, 0.0
        %v1238 = vsel %vm1222, %v1196, 0.0
        %v1239 = vsel %vm1223, %v1197, 0.0
        %v1240 = vsel %vm1224, %v1198, 0.0
        %v1241 = vsel %vm1225, %v1199, 0.0
        %v1242 = vsel %vm1226, %v1200, 0.0
        %1243 = vrot.lane.b32.xlu0 %v552, 1
        %v1244 = vpop.permute.xlu0 %1243
        %1245 = vrot.lane.b32.xlu0 %v598, 1
        %v1246 = vpop.permute.xlu0 %1245
        %1247 = vrot.lane.b32.xlu0 %v644, 1
        %v1248 = vpop.permute.xlu0 %1247
        %1249 = vrot.lane.b32.xlu0 %v690, 1
        %v1250 = vpop.permute.xlu0 %1249
        %1251 = vrot.lane.b32.xlu0 %v736, 1
        %v1252 = vpop.permute.xlu0 %1251
        %1253 = vrot.lane.b32.xlu0 %v782, 1
        %v1254 = vpop.permute.xlu0 %1253
        %1255 = vrot.lane.b32.xlu0 %v828, 1
        %v1256 = vpop.permute.xlu0 %1255
        %1257 = vrot.lane.b32.xlu0 %v874, 1
        %v1258 = vpop.permute.xlu0 %1257
        %1259 = vrot.lane.b32.xlu0 %v555, 1
        %v1260 = vpop.permute.xlu0 %1259
        %1261 = vrot.lane.b32.xlu0 %v601, 1
        %v1262 = vpop.permute.xlu0 %1261
        %1263 = vrot.lane.b32.xlu0 %v647, 1
        %v1264 = vpop.permute.xlu0 %1263
        %1265 = vrot.lane.b32.xlu0 %v693, 1
        %v1266 = vpop.permute.xlu0 %1265
        %1267 = vrot.lane.b32.xlu0 %v739, 1
        %v1268 = vpop.permute.xlu0 %1267
        %1269 = vrot.lane.b32.xlu0 %v785, 1
        %v1270 = vpop.permute.xlu0 %1269
        %1271 = vrot.lane.b32.xlu0 %v831, 1
        %v1272 = vpop.permute.xlu0 %1271
        %1273 = vrot.lane.b32.xlu0 %v877, 1
        %v1274 = vpop.permute.xlu0 %1273
        %vm1275 = vcmask 7168
        %v1276 = vsel %vm1275, %v1244, %v1246
        %v1277 = vsel %vm1275, %v1246, %v1248
        %v1278 = vsel %vm1275, %v1248, %v1250
        %v1279 = vsel %vm1275, %v1250, %v1252
        %v1280 = vsel %vm1275, %v1252, %v1254
        %v1281 = vsel %vm1275, %v1254, %v1256
        %v1282 = vsel %vm1275, %v1256, %v1258
        %v1283 = vsel %vm1275, %v1260, %v1262
        %v1284 = vsel %vm1275, %v1262, %v1264
        %v1285 = vsel %vm1275, %v1264, %v1266
        %v1286 = vsel %vm1275, %v1266, %v1268
        %v1287 = vsel %vm1275, %v1268, %v1270
        %v1288 = vsel %vm1275, %v1270, %v1272
        %v1289 = vsel %vm1275, %v1272, %v1274
        %v1306 = vsel %vm1275, 0.0, %v1244
        %v1307 = vsel %vm1275, 0.0, %v1260
        %v1308 = vsel %vm1065, %v1306, 0.0
        %v1309 = vsel %vm1066, %v1276, 0.0
        %v1310 = vsel %vm1067, %v1277, 0.0
        %v1311 = vsel %vm1068, %v1278, 0.0
        %v1312 = vsel %vm1069, %v1279, 0.0
        %v1313 = vsel %vm1070, %v1280, 0.0
        %v1314 = vsel %vm1071, %v1281, 0.0
        %v1315 = vsel %vm1072, %v1282, 0.0
        %v1316 = vsel %vm1065, %v1307, 0.0
        %v1317 = vsel %vm1066, %v1283, 0.0
        %v1318 = vsel %vm1067, %v1284, 0.0
        %v1319 = vsel %vm1068, %v1285, 0.0
        %v1320 = vsel %vm1069, %v1286, 0.0
        %v1321 = vsel %vm1070, %v1287, 0.0
        %v1322 = vsel %vm1071, %v1288, 0.0
        %v1323 = vsel %vm1072, %v1289, 0.0
        %1324 = vrot.lane.b32.xlu0 %v552, 127
        %v1325 = vpop.permute.xlu0 %1324
        %1326 = vrot.lane.b32.xlu0 %v598, 127
        %v1327 = vpop.permute.xlu0 %1326
        %1328 = vrot.lane.b32.xlu0 %v644, 127
        %v1329 = vpop.permute.xlu0 %1328
        %1330 = vrot.lane.b32.xlu0 %v690, 127
        %v1331 = vpop.permute.xlu0 %1330
        %1332 = vrot.lane.b32.xlu0 %v736, 127
        %v1333 = vpop.permute.xlu0 %1332
        %1334 = vrot.lane.b32.xlu0 %v782, 127
        %v1335 = vpop.permute.xlu0 %1334
        %1336 = vrot.lane.b32.xlu0 %v828, 127
        %v1337 = vpop.permute.xlu0 %1336
        %1338 = vrot.lane.b32.xlu0 %v874, 127
        %v1339 = vpop.permute.xlu0 %1338
        %1340 = vrot.lane.b32.xlu0 %v555, 127
        %v1341 = vpop.permute.xlu0 %1340
        %1342 = vrot.lane.b32.xlu0 %v601, 127
        %v1343 = vpop.permute.xlu0 %1342
        %1344 = vrot.lane.b32.xlu0 %v647, 127
        %v1345 = vpop.permute.xlu0 %1344
        %1346 = vrot.lane.b32.xlu0 %v693, 127
        %v1347 = vpop.permute.xlu0 %1346
        %1348 = vrot.lane.b32.xlu0 %v739, 127
        %v1349 = vpop.permute.xlu0 %1348
        %1350 = vrot.lane.b32.xlu0 %v785, 127
        %v1351 = vpop.permute.xlu0 %1350
        %1352 = vrot.lane.b32.xlu0 %v831, 127
        %v1353 = vpop.permute.xlu0 %1352
        %1354 = vrot.lane.b32.xlu0 %v877, 127
        %v1355 = vpop.permute.xlu0 %1354
        %vm1356 = vcmask 1039360
        %v1357 = vsel %vm1356, %v1325, %v1327
        %v1358 = vsel %vm1356, %v1327, %v1329
        %v1359 = vsel %vm1356, %v1329, %v1331
        %v1360 = vsel %vm1356, %v1331, %v1333
        %v1361 = vsel %vm1356, %v1333, %v1335
        %v1362 = vsel %vm1356, %v1335, %v1337
        %v1363 = vsel %vm1356, %v1337, %v1339
        %v1364 = vsel %vm1356, %v1341, %v1343
        %v1365 = vsel %vm1356, %v1343, %v1345
        %v1366 = vsel %vm1356, %v1345, %v1347
        %v1367 = vsel %vm1356, %v1347, %v1349
        %v1368 = vsel %vm1356, %v1349, %v1351
        %v1369 = vsel %vm1356, %v1351, %v1353
        %v1370 = vsel %vm1356, %v1353, %v1355
        %v1387 = vsel %vm1356, %v1339, 0.0
        %v1388 = vsel %vm1356, %v1355, 0.0
        %v1389 = vsel %vm1219, %v1357, 0.0
        %v1390 = vsel %vm1220, %v1358, 0.0
        %v1391 = vsel %vm1221, %v1359, 0.0
        %v1392 = vsel %vm1222, %v1360, 0.0
        %v1393 = vsel %vm1223, %v1361, 0.0
        %v1394 = vsel %vm1224, %v1362, 0.0
        %v1395 = vsel %vm1225, %v1363, 0.0
        %v1396 = vsel %vm1226, %v1387, 0.0
        %v1397 = vsel %vm1219, %v1364, 0.0
        %v1398 = vsel %vm1220, %v1365, 0.0
        %v1399 = vsel %vm1221, %v1366, 0.0
        %v1400 = vsel %vm1222, %v1367, 0.0
        %v1401 = vsel %vm1223, %v1368, 0.0
        %v1402 = vsel %vm1224, %v1369, 0.0
        %v1403 = vsel %vm1225, %v1370, 0.0
        %v1404 = vsel %vm1226, %v1388, 0.0
        %1405 = vrot.lane.b32.xlu0 %v552, 97
        %v1406 = vpop.permute.xlu0 %1405
        %1407 = vrot.lane.b32.xlu0 %v598, 97
        %v1408 = vpop.permute.xlu0 %1407
        %1409 = vrot.lane.b32.xlu0 %v644, 97
        %v1410 = vpop.permute.xlu0 %1409
        %1411 = vrot.lane.b32.xlu0 %v690, 97
        %v1412 = vpop.permute.xlu0 %1411
        %1413 = vrot.lane.b32.xlu0 %v736, 97
        %v1414 = vpop.permute.xlu0 %1413
        %1415 = vrot.lane.b32.xlu0 %v782, 97
        %v1416 = vpop.permute.xlu0 %1415
        %1417 = vrot.lane.b32.xlu0 %v828, 97
        %v1418 = vpop.permute.xlu0 %1417
        %1419 = vrot.lane.b32.xlu0 %v874, 97
        %v1420 = vpop.permute.xlu0 %1419
        %1421 = vrot.lane.b32.xlu0 %v555, 97
        %v1422 = vpop.permute.xlu0 %1421
        %1423 = vrot.lane.b32.xlu0 %v601, 97
        %v1424 = vpop.permute.xlu0 %1423
        %1425 = vrot.lane.b32.xlu0 %v647, 97
        %v1426 = vpop.permute.xlu0 %1425
        %1427 = vrot.lane.b32.xlu0 %v693, 97
        %v1428 = vpop.permute.xlu0 %1427
        %1429 = vrot.lane.b32.xlu0 %v739, 97
        %v1430 = vpop.permute.xlu0 %1429
        %1431 = vrot.lane.b32.xlu0 %v785, 97
        %v1432 = vpop.permute.xlu0 %1431
        %1433 = vrot.lane.b32.xlu0 %v831, 97
        %v1434 = vpop.permute.xlu0 %1433
        %1435 = vrot.lane.b32.xlu0 %v877, 97
        %v1436 = vpop.permute.xlu0 %1435
        %vm1437 = vcmask 793600
        %v1438 = vsel %vm1437, %v1406, %v1408
        %v1439 = vsel %vm1437, %v1408, %v1410
        %v1440 = vsel %vm1437, %v1410, %v1412
        %v1441 = vsel %vm1437, %v1412, %v1414
        %v1442 = vsel %vm1437, %v1414, %v1416
        %v1443 = vsel %vm1437, %v1416, %v1418
        %v1444 = vsel %vm1437, %v1418, %v1420
        %v1445 = vsel %vm1437, %v1422, %v1424
        %v1446 = vsel %vm1437, %v1424, %v1426
        %v1447 = vsel %vm1437, %v1426, %v1428
        %v1448 = vsel %vm1437, %v1428, %v1430
        %v1449 = vsel %vm1437, %v1430, %v1432
        %v1450 = vsel %vm1437, %v1432, %v1434
        %v1451 = vsel %vm1437, %v1434, %v1436
        %v1468 = vsel %vm1437, %v1420, 0.0
        %v1469 = vsel %vm1437, %v1436, 0.0
        %v1470 = vsel %vm1065, %v1438, 0.0
        %v1471 = vsel %vm1066, %v1439, 0.0
        %v1472 = vsel %vm1067, %v1440, 0.0
        %v1473 = vsel %vm1068, %v1441, 0.0
        %v1474 = vsel %vm1069, %v1442, 0.0
        %v1475 = vsel %vm1070, %v1443, 0.0
        %v1476 = vsel %vm1071, %v1444, 0.0
        %v1477 = vsel %vm1072, %v1468, 0.0
        %v1478 = vsel %vm1065, %v1445, 0.0
        %v1479 = vsel %vm1066, %v1446, 0.0
        %v1480 = vsel %vm1067, %v1447, 0.0
        %v1481 = vsel %vm1068, %v1448, 0.0
        %v1482 = vsel %vm1069, %v1449, 0.0
        %v1483 = vsel %vm1070, %v1450, 0.0
        %v1484 = vsel %vm1071, %v1451, 0.0
        %v1485 = vsel %vm1072, %v1469, 0.0
        %1486 = vrot.lane.b32.xlu0 %v552, 96
        %v1487 = vpop.permute.xlu0 %1486
        %1488 = vrot.lane.b32.xlu0 %v598, 96
        %v1489 = vpop.permute.xlu0 %1488
        %1490 = vrot.lane.b32.xlu0 %v644, 96
        %v1491 = vpop.permute.xlu0 %1490
        %1492 = vrot.lane.b32.xlu0 %v690, 96
        %v1493 = vpop.permute.xlu0 %1492
        %1494 = vrot.lane.b32.xlu0 %v736, 96
        %v1495 = vpop.permute.xlu0 %1494
        %1496 = vrot.lane.b32.xlu0 %v782, 96
        %v1497 = vpop.permute.xlu0 %1496
        %1498 = vrot.lane.b32.xlu0 %v828, 96
        %v1499 = vpop.permute.xlu0 %1498
        %1500 = vrot.lane.b32.xlu0 %v874, 96
        %v1501 = vpop.permute.xlu0 %1500
        %1502 = vrot.lane.b32.xlu0 %v555, 96
        %v1503 = vpop.permute.xlu0 %1502
        %1504 = vrot.lane.b32.xlu0 %v601, 96
        %v1505 = vpop.permute.xlu0 %1504
        %1506 = vrot.lane.b32.xlu0 %v647, 96
        %v1507 = vpop.permute.xlu0 %1506
        %1508 = vrot.lane.b32.xlu0 %v693, 96
        %v1509 = vpop.permute.xlu0 %1508
        %1510 = vrot.lane.b32.xlu0 %v739, 96
        %v1511 = vpop.permute.xlu0 %1510
        %1512 = vrot.lane.b32.xlu0 %v785, 96
        %v1513 = vpop.permute.xlu0 %1512
        %1514 = vrot.lane.b32.xlu0 %v831, 96
        %v1515 = vpop.permute.xlu0 %1514
        %1516 = vrot.lane.b32.xlu0 %v877, 96
        %v1517 = vpop.permute.xlu0 %1516
        %vm1518 = vcmask 785408
        %v1519 = vsel %vm1518, %v1487, %v1489
        %v1520 = vsel %vm1518, %v1489, %v1491
        %v1521 = vsel %vm1518, %v1491, %v1493
        %v1522 = vsel %vm1518, %v1493, %v1495
        %v1523 = vsel %vm1518, %v1495, %v1497
        %v1524 = vsel %vm1518, %v1497, %v1499
        %v1525 = vsel %vm1518, %v1499, %v1501
        %v1526 = vsel %vm1518, %v1503, %v1505
        %v1527 = vsel %vm1518, %v1505, %v1507
        %v1528 = vsel %vm1518, %v1507, %v1509
        %v1529 = vsel %vm1518, %v1509, %v1511
        %v1530 = vsel %vm1518, %v1511, %v1513
        %v1531 = vsel %vm1518, %v1513, %v1515
        %v1532 = vsel %vm1518, %v1515, %v1517
        %v1549 = vsel %vm1518, %v1501, 0.0
        %v1550 = vsel %vm1518, %v1517, 0.0
        %1551 = vrot.lane.b32.xlu0 %v552, 95
        %v1552 = vpop.permute.xlu0 %1551
        %1553 = vrot.lane.b32.xlu0 %v598, 95
        %v1554 = vpop.permute.xlu0 %1553
        %1555 = vrot.lane.b32.xlu0 %v644, 95
        %v1556 = vpop.permute.xlu0 %1555
        %1557 = vrot.lane.b32.xlu0 %v690, 95
        %v1558 = vpop.permute.xlu0 %1557
        %1559 = vrot.lane.b32.xlu0 %v736, 95
        %v1560 = vpop.permute.xlu0 %1559
        %1561 = vrot.lane.b32.xlu0 %v782, 95
        %v1562 = vpop.permute.xlu0 %1561
        %1563 = vrot.lane.b32.xlu0 %v828, 95
        %v1564 = vpop.permute.xlu0 %1563
        %1565 = vrot.lane.b32.xlu0 %v874, 95
        %v1566 = vpop.permute.xlu0 %1565
        %1567 = vrot.lane.b32.xlu0 %v555, 95
        %v1568 = vpop.permute.xlu0 %1567
        %1569 = vrot.lane.b32.xlu0 %v601, 95
        %v1570 = vpop.permute.xlu0 %1569
        %1571 = vrot.lane.b32.xlu0 %v647, 95
        %v1572 = vpop.permute.xlu0 %1571
        %1573 = vrot.lane.b32.xlu0 %v693, 95
        %v1574 = vpop.permute.xlu0 %1573
        %1575 = vrot.lane.b32.xlu0 %v739, 95
        %v1576 = vpop.permute.xlu0 %1575
        %1577 = vrot.lane.b32.xlu0 %v785, 95
        %v1578 = vpop.permute.xlu0 %1577
        %1579 = vrot.lane.b32.xlu0 %v831, 95
        %v1580 = vpop.permute.xlu0 %1579
        %1581 = vrot.lane.b32.xlu0 %v877, 95
        %v1582 = vpop.permute.xlu0 %1581
        %vm1583 = vcmask 777216
        %v1584 = vsel %vm1583, %v1552, %v1554
        %v1585 = vsel %vm1583, %v1554, %v1556
        %v1586 = vsel %vm1583, %v1556, %v1558
        %v1587 = vsel %vm1583, %v1558, %v1560
        %v1588 = vsel %vm1583, %v1560, %v1562
        %v1589 = vsel %vm1583, %v1562, %v1564
        %v1590 = vsel %vm1583, %v1564, %v1566
        %v1591 = vsel %vm1583, %v1568, %v1570
        %v1592 = vsel %vm1583, %v1570, %v1572
        %v1593 = vsel %vm1583, %v1572, %v1574
        %v1594 = vsel %vm1583, %v1574, %v1576
        %v1595 = vsel %vm1583, %v1576, %v1578
        %v1596 = vsel %vm1583, %v1578, %v1580
        %v1597 = vsel %vm1583, %v1580, %v1582
        %v1614 = vsel %vm1583, %v1566, 0.0
        %v1615 = vsel %vm1583, %v1582, 0.0
        %v1616 = vsel %vm1219, %v1584, 0.0
        %v1617 = vsel %vm1220, %v1585, 0.0
        %v1618 = vsel %vm1221, %v1586, 0.0
        %v1619 = vsel %vm1222, %v1587, 0.0
        %v1620 = vsel %vm1223, %v1588, 0.0
        %v1621 = vsel %vm1224, %v1589, 0.0
        %v1622 = vsel %vm1225, %v1590, 0.0
        %v1623 = vsel %vm1226, %v1614, 0.0
        %v1624 = vsel %vm1219, %v1591, 0.0
        %v1625 = vsel %vm1220, %v1592, 0.0
        %v1626 = vsel %vm1221, %v1593, 0.0
        %v1627 = vsel %vm1222, %v1594, 0.0
        %v1628 = vsel %vm1223, %v1595, 0.0
        %v1629 = vsel %vm1224, %v1596, 0.0
        %v1630 = vsel %vm1225, %v1597, 0.0
        %v1631 = vsel %vm1226, %v1615, 0.0
        %v1632 = vld [vmem:[#allocation7] sm:$0xff]
        %v1633 = vld [vmem:[#allocation7 + $0x8] sm:$0xff]
        %v1634 = vld [vmem:[#allocation7 + $0x10] sm:$0xff]
        %v1635 = vld [vmem:[#allocation7 + $0x18] sm:$0xff]
        %v1636 = vld [vmem:[#allocation7 + $0x20] sm:$0xff]
        %v1637 = vld [vmem:[#allocation7 + $0x28] sm:$0xff]
        %v1638 = vld [vmem:[#allocation7 + $0x30] sm:$0xff]
        %v1639 = vld [vmem:[#allocation7 + $0x38] sm:$0xff]
        %v1640 = vld [vmem:[%s3] sm:$0xff]
        %v1641 = vld [vmem:[%s3 + $0x8] sm:$0xff]
        %v1642 = vld [vmem:[%s3 + $0x10] sm:$0xff]
        %v1643 = vld [vmem:[%s3 + $0x18] sm:$0xff]
        %1645 = vset.pattern.permute.xlu0 0
        %1646 = vperm.xlu0 %1645, %v1640
        %v1647 = vpop.permute.xlu0 %1646
        %1650 = vset.pattern.permute.xlu0 0
        %1651 = vperm.xlu0 %1650, %v1641
        %v1652 = vpop.permute.xlu0 %1651
        %1655 = vset.pattern.permute.xlu0 0
        %1656 = vperm.xlu0 %1655, %v1642
        %v1657 = vpop.permute.xlu0 %1656
        %1660 = vset.pattern.permute.xlu0 0
        %1661 = vperm.xlu0 %1660, %v1643
        %v1662 = vpop.permute.xlu0 %1661
        %vm1664 = vcmask 130048
        %v1666 = vsel %vm1664, %v1633, 0
        %v1669 = vsel %vm1664, %v1635, 0
        %v1672 = vsel %vm1664, %v1637, 0
        %v1675 = vsel %vm1664, %v1639, 0
        %1677 = vmatpush.msra.mxu0 %v1526
        %1678 = vmatpush.msra.mxu0 %v1519
        %1679 = vmatpush.msra.mxu0 %v1478
        %1680 = vmatpush.msra.mxu0 %v1470
        %1681 = vmatpush.msra.mxu0 %v1397
        %1682 = vmatpush.msra.mxu0 %v1389
        %1683 = vmatpush.msra.mxu0 %v555
        %1684 = vmatpush.msra.mxu0 %v552
        %1685 = vmatpush.msra.mxu0 %v1316
        %1686 = vmatpush.msra.mxu0 %v1308
        %1687 = vmatpush.msra.mxu0 %v1235
        %1688 = vmatpush.msra.mxu0 %v1227
        %1689 = vmatpush.msra.mxu0 %v1153
        %1690 = vmatpush.msra.mxu0 %v1152
        %1691 = vmatpush.msra.mxu0 %v1081
        %1692 = vmatpush.msra.mxu0 %v1073
        %1693 = vmatmul.f32.gmra.mxu0 %v1632
        %v1694 = vpop.f32.mrf.mxu0
        %v1695 = vadd.f32 %v1647, %v1694
        %1696 = vmatmul.f32.gmra.mxu0 %v1634
        %v1697 = vpop.f32.mrf.mxu0
        %v1698 = vadd.f32 %v1652, %v1697
        %1699 = vmatmul.f32.gmra.mxu0 %v1636
        %v1700 = vpop.f32.mrf.mxu0
        %v1701 = vadd.f32 %v1657, %v1700
        %1702 = vmatmul.f32.gmra.mxu0 %v1638
        %v1703 = vpop.f32.mrf.mxu0
        %v1704 = vadd.f32 %v1662, %v1703
        %1705 = vdwg.mxu0
        %1706 = vmatpush.msra.mxu0 0.0
        %1707 = vmatpush.msra.mxu0 0.0
        %1708 = vmatpush.msra.mxu0 0.0
        %1709 = vmatpush.msra.mxu0 0.0
        %1710 = vmatpush.msra.mxu0 0.0
        %1711 = vmatpush.msra.mxu0 0.0
        %1712 = vmatpush.msra.mxu0 0.0
        %1713 = vmatpush.msra.mxu0 0.0
        %1714 = vmatpush.msra.mxu0 0.0
        %1715 = vmatpush.msra.mxu0 0.0
        %1716 = vmatpush.msra.mxu0 0.0
        %1717 = vmatpush.msra.mxu0 0.0
        %1718 = vmatpush.msra.mxu0 0.0
        %1719 = vmatpush.msra.mxu0 0.0
        %1720 = vmatpush.msra.mxu0 %v1624
        %1721 = vmatpush.msra.mxu0 %v1616
        %1722 = vmatmul.f32.gmra.mxu0 %v1666
        %v1723 = vpop.f32.mrf.mxu0
        %v1724 = vadd.f32 %v1695, %v1723
        %1725 = vmatmul.f32.gmra.mxu0 %v1669
        %v1726 = vpop.f32.mrf.mxu0
        %v1727 = vadd.f32 %v1698, %v1726
        %1728 = vmatmul.f32.gmra.mxu0 %v1672
        %v1729 = vpop.f32.mrf.mxu0
        %v1730 = vadd.f32 %v1701, %v1729
        %1731 = vmatmul.f32.gmra.mxu0 %v1675
        %v1732 = vpop.f32.mrf.mxu0
        %v1733 = vadd.f32 %v1704, %v1732
        %1734 = vdwg.mxu0
        %1735 = vmatpush.msra.mxu0 %v1527
        %1736 = vmatpush.msra.mxu0 %v1520
        %1737 = vmatpush.msra.mxu0 %v1479
        %1738 = vmatpush.msra.mxu0 %v1471
        %1739 = vmatpush.msra.mxu0 %v1398
        %1740 = vmatpush.msra.mxu0 %v1390
        %1741 = vmatpush.msra.mxu0 %v601
        %1742 = vmatpush.msra.mxu0 %v598
        %1743 = vmatpush.msra.mxu0 %v1317
        %1744 = vmatpush.msra.mxu0 %v1309
        %1745 = vmatpush.msra.mxu0 %v1236
        %1746 = vmatpush.msra.mxu0 %v1228
        %1747 = vmatpush.msra.mxu0 %v1129
        %1748 = vmatpush.msra.mxu0 %v1122
        %1749 = vmatpush.msra.mxu0 %v1082
        %1750 = vmatpush.msra.mxu0 %v1074
        %1751 = vmatmul.f32.gmra.mxu0 %v1632
        %v1752 = vpop.f32.mrf.mxu0
        %v1753 = vadd.f32 %v1647, %v1752
        %1754 = vmatmul.f32.gmra.mxu0 %v1634
        %v1755 = vpop.f32.mrf.mxu0
        %v1756 = vadd.f32 %v1652, %v1755
        %1757 = vmatmul.f32.gmra.mxu0 %v1636
        %v1758 = vpop.f32.mrf.mxu0
        %v1759 = vadd.f32 %v1657, %v1758
        %1760 = vmatmul.f32.gmra.mxu0 %v1638
        %v1761 = vpop.f32.mrf.mxu0
        %v1762 = vadd.f32 %v1662, %v1761
        %1763 = vdwg.mxu0
        %1764 = vmatpush.msra.mxu0 0.0
        %1765 = vmatpush.msra.mxu0 0.0
        %1766 = vmatpush.msra.mxu0 0.0
        %1767 = vmatpush.msra.mxu0 0.0
        %1768 = vmatpush.msra.mxu0 0.0
        %1769 = vmatpush.msra.mxu0 0.0
        %1770 = vmatpush.msra.mxu0 0.0
        %1771 = vmatpush.msra.mxu0 0.0
        %1772 = vmatpush.msra.mxu0 0.0
        %1773 = vmatpush.msra.mxu0 0.0
        %1774 = vmatpush.msra.mxu0 0.0
        %1775 = vmatpush.msra.mxu0 0.0
        %1776 = vmatpush.msra.mxu0 0.0
        %1777 = vmatpush.msra.mxu0 0.0
        %1778 = vmatpush.msra.mxu0 %v1625
        %1779 = vmatpush.msra.mxu0 %v1617
        %1780 = vmatmul.f32.gmra.mxu0 %v1666
        %v1781 = vpop.f32.mrf.mxu0
        %v1782 = vadd.f32 %v1753, %v1781
        %1783 = vmatmul.f32.gmra.mxu0 %v1669
        %v1784 = vpop.f32.mrf.mxu0
        %v1785 = vadd.f32 %v1756, %v1784
        %1786 = vmatmul.f32.gmra.mxu0 %v1672
        %v1787 = vpop.f32.mrf.mxu0
        %v1788 = vadd.f32 %v1759, %v1787
        %1789 = vmatmul.f32.gmra.mxu0 %v1675
        %v1790 = vpop.f32.mrf.mxu0
        %v1791 = vadd.f32 %v1762, %v1790
        %1792 = vdwg.mxu0
        %1793 = vmatpush.msra.mxu0 %v1528
        %1794 = vmatpush.msra.mxu0 %v1521
        %1795 = vmatpush.msra.mxu0 %v1480
        %1796 = vmatpush.msra.mxu0 %v1472
        %1797 = vmatpush.msra.mxu0 %v1399
        %1798 = vmatpush.msra.mxu0 %v1391
        %1799 = vmatpush.msra.mxu0 %v647
        %1800 = vmatpush.msra.mxu0 %v644
        %1801 = vmatpush.msra.mxu0 %v1318
        %1802 = vmatpush.msra.mxu0 %v1310
        %1803 = vmatpush.msra.mxu0 %v1237
        %1804 = vmatpush.msra.mxu0 %v1229
        %1805 = vmatpush.msra.mxu0 %v1130
        %1806 = vmatpush.msra.mxu0 %v1123
        %1807 = vmatpush.msra.mxu0 %v1083
        %1808 = vmatpush.msra.mxu0 %v1075
        %1809 = vmatmul.f32.gmra.mxu0 %v1632
        %v1810 = vpop.f32.mrf.mxu0
        %v1811 = vadd.f32 %v1647, %v1810
        %1812 = vmatmul.f32.gmra.mxu0 %v1634
        %v1813 = vpop.f32.mrf.mxu0
        %v1814 = vadd.f32 %v1652, %v1813
        %1815 = vmatmul.f32.gmra.mxu0 %v1636
        %v1816 = vpop.f32.mrf.mxu0
        %v1817 = vadd.f32 %v1657, %v1816
        %1818 = vmatmul.f32.gmra.mxu0 %v1638
        %v1819 = vpop.f32.mrf.mxu0
        %v1820 = vadd.f32 %v1662, %v1819
        %1821 = vdwg.mxu0
        %1822 = vmatpush.msra.mxu0 0.0
        %1823 = vmatpush.msra.mxu0 0.0
        %1824 = vmatpush.msra.mxu0 0.0
        %1825 = vmatpush.msra.mxu0 0.0
        %1826 = vmatpush.msra.mxu0 0.0
        %1827 = vmatpush.msra.mxu0 0.0
        %1828 = vmatpush.msra.mxu0 0.0
        %1829 = vmatpush.msra.mxu0 0.0
        %1830 = vmatpush.msra.mxu0 0.0
        %1831 = vmatpush.msra.mxu0 0.0
        %1832 = vmatpush.msra.mxu0 0.0
        %1833 = vmatpush.msra.mxu0 0.0
        %1834 = vmatpush.msra.mxu0 0.0
        %1835 = vmatpush.msra.mxu0 0.0
        %1836 = vmatpush.msra.mxu0 %v1626
        %1837 = vmatpush.msra.mxu0 %v1618
        %1838 = vmatmul.f32.gmra.mxu0 %v1666
        %v1839 = vpop.f32.mrf.mxu0
        %v1840 = vadd.f32 %v1811, %v1839
        %1841 = vmatmul.f32.gmra.mxu0 %v1669
        %v1842 = vpop.f32.mrf.mxu0
        %v1843 = vadd.f32 %v1814, %v1842
        %1844 = vmatmul.f32.gmra.mxu0 %v1672
        %v1845 = vpop.f32.mrf.mxu0
        %v1846 = vadd.f32 %v1817, %v1845
        %1847 = vmatmul.f32.gmra.mxu0 %v1675
        %v1848 = vpop.f32.mrf.mxu0
        %v1849 = vadd.f32 %v1820, %v1848
        %1850 = vdwg.mxu0
        %1851 = vmatpush.msra.mxu0 %v1529
        %1852 = vmatpush.msra.mxu0 %v1522
        %1853 = vmatpush.msra.mxu0 %v1481
        %1854 = vmatpush.msra.mxu0 %v1473
        %1855 = vmatpush.msra.mxu0 %v1400
        %1856 = vmatpush.msra.mxu0 %v1392
        %1857 = vmatpush.msra.mxu0 %v693
        %1858 = vmatpush.msra.mxu0 %v690
        %1859 = vmatpush.msra.mxu0 %v1319
        %1860 = vmatpush.msra.mxu0 %v1311
        %1861 = vmatpush.msra.mxu0 %v1238
        %1862 = vmatpush.msra.mxu0 %v1230
        %1863 = vmatpush.msra.mxu0 %v1131
        %1864 = vmatpush.msra.mxu0 %v1124
        %1865 = vmatpush.msra.mxu0 %v1084
        %1866 = vmatpush.msra.mxu0 %v1076
        %1867 = vmatmul.f32.gmra.mxu0 %v1632
        %v1868 = vpop.f32.mrf.mxu0
        %v1869 = vadd.f32 %v1647, %v1868
        %1870 = vmatmul.f32.gmra.mxu0 %v1634
        %v1871 = vpop.f32.mrf.mxu0
        %v1872 = vadd.f32 %v1652, %v1871
        %1873 = vmatmul.f32.gmra.mxu0 %v1636
        %v1874 = vpop.f32.mrf.mxu0
        %v1875 = vadd.f32 %v1657, %v1874
        %1876 = vmatmul.f32.gmra.mxu0 %v1638
        %v1877 = vpop.f32.mrf.mxu0
        %v1878 = vadd.f32 %v1662, %v1877
        %1879 = vdwg.mxu0
        %1880 = vmatpush.msra.mxu0 0.0
        %1881 = vmatpush.msra.mxu0 0.0
        %1882 = vmatpush.msra.mxu0 0.0
        %1883 = vmatpush.msra.mxu0 0.0
        %1884 = vmatpush.msra.mxu0 0.0
        %1885 = vmatpush.msra.mxu0 0.0
        %1886 = vmatpush.msra.mxu0 0.0
        %1887 = vmatpush.msra.mxu0 0.0
        %1888 = vmatpush.msra.mxu0 0.0
        %1889 = vmatpush.msra.mxu0 0.0
        %1890 = vmatpush.msra.mxu0 0.0
        %1891 = vmatpush.msra.mxu0 0.0
        %1892 = vmatpush.msra.mxu0 0.0
        %1893 = vmatpush.msra.mxu0 0.0
        %1894 = vmatpush.msra.mxu0 %v1627
        %1895 = vmatpush.msra.mxu0 %v1619
        %1896 = vmatmul.f32.gmra.mxu0 %v1666
        %v1897 = vpop.f32.mrf.mxu0
        %v1898 = vadd.f32 %v1869, %v1897
        %1899 = vmatmul.f32.gmra.mxu0 %v1669
        %v1900 = vpop.f32.mrf.mxu0
        %v1901 = vadd.f32 %v1872, %v1900
        %1902 = vmatmul.f32.gmra.mxu0 %v1672
        %v1903 = vpop.f32.mrf.mxu0
        %v1904 = vadd.f32 %v1875, %v1903
        %1905 = vmatmul.f32.gmra.mxu0 %v1675
        %v1906 = vpop.f32.mrf.mxu0
        %v1907 = vadd.f32 %v1878, %v1906
        %1908 = vdwg.mxu0
        %1909 = vmatpush.msra.mxu0 %v1530
        %1910 = vmatpush.msra.mxu0 %v1523
        %1911 = vmatpush.msra.mxu0 %v1482
        %1912 = vmatpush.msra.mxu0 %v1474
        %1913 = vmatpush.msra.mxu0 %v1401
        %1914 = vmatpush.msra.mxu0 %v1393
        %1915 = vmatpush.msra.mxu0 %v739
        %1916 = vmatpush.msra.mxu0 %v736
        %1917 = vmatpush.msra.mxu0 %v1320
        %1918 = vmatpush.msra.mxu0 %v1312
        %1919 = vmatpush.msra.mxu0 %v1239
        %1920 = vmatpush.msra.mxu0 %v1231
        %1921 = vmatpush.msra.mxu0 %v1132
        %1922 = vmatpush.msra.mxu0 %v1125
        %1923 = vmatpush.msra.mxu0 %v1085
        %1924 = vmatpush.msra.mxu0 %v1077
        %1925 = vmatmul.f32.gmra.mxu0 %v1632
        %v1926 = vpop.f32.mrf.mxu0
        %v1927 = vadd.f32 %v1647, %v1926
        %1928 = vmatmul.f32.gmra.mxu0 %v1634
        %v1929 = vpop.f32.mrf.mxu0
        %v1930 = vadd.f32 %v1652, %v1929
        %1931 = vmatmul.f32.gmra.mxu0 %v1636
        %v1932 = vpop.f32.mrf.mxu0
        %v1933 = vadd.f32 %v1657, %v1932
        %1934 = vmatmul.f32.gmra.mxu0 %v1638
        %v1935 = vpop.f32.mrf.mxu0
        %v1936 = vadd.f32 %v1662, %v1935
        %1937 = vdwg.mxu0
        %1938 = vmatpush.msra.mxu0 0.0
        %1939 = vmatpush.msra.mxu0 0.0
        %1940 = vmatpush.msra.mxu0 0.0
        %1941 = vmatpush.msra.mxu0 0.0
        %1942 = vmatpush.msra.mxu0 0.0
        %1943 = vmatpush.msra.mxu0 0.0
        %1944 = vmatpush.msra.mxu0 0.0
        %1945 = vmatpush.msra.mxu0 0.0
        %1946 = vmatpush.msra.mxu0 0.0
        %1947 = vmatpush.msra.mxu0 0.0
        %1948 = vmatpush.msra.mxu0 0.0
        %1949 = vmatpush.msra.mxu0 0.0
        %1950 = vmatpush.msra.mxu0 0.0
        %1951 = vmatpush.msra.mxu0 0.0
        %1952 = vmatpush.msra.mxu0 %v1628
        %1953 = vmatpush.msra.mxu0 %v1620
        %1954 = vmatmul.f32.gmra.mxu0 %v1666
        %v1955 = vpop.f32.mrf.mxu0
        %v1956 = vadd.f32 %v1927, %v1955
        %1957 = vmatmul.f32.gmra.mxu0 %v1669
        %v1958 = vpop.f32.mrf.mxu0
        %v1959 = vadd.f32 %v1930, %v1958
        %1960 = vmatmul.f32.gmra.mxu0 %v1672
        %v1961 = vpop.f32.mrf.mxu0
        %v1962 = vadd.f32 %v1933, %v1961
        %1963 = vmatmul.f32.gmra.mxu0 %v1675
        %v1964 = vpop.f32.mrf.mxu0
        %v1965 = vadd.f32 %v1936, %v1964
        %1966 = vdwg.mxu0
        %1967 = vmatpush.msra.mxu0 %v1531
        %1968 = vmatpush.msra.mxu0 %v1524
        %1969 = vmatpush.msra.mxu0 %v1483
        %1970 = vmatpush.msra.mxu0 %v1475
        %1971 = vmatpush.msra.mxu0 %v1402
        %1972 = vmatpush.msra.mxu0 %v1394
        %1973 = vmatpush.msra.mxu0 %v785
        %1974 = vmatpush.msra.mxu0 %v782
        %1975 = vmatpush.msra.mxu0 %v1321
        %1976 = vmatpush.msra.mxu0 %v1313
        %1977 = vmatpush.msra.mxu0 %v1240
        %1978 = vmatpush.msra.mxu0 %v1232
        %1979 = vmatpush.msra.mxu0 %v1133
        %1980 = vmatpush.msra.mxu0 %v1126
        %1981 = vmatpush.msra.mxu0 %v1086
        %1982 = vmatpush.msra.mxu0 %v1078
        %1983 = vmatmul.f32.gmra.mxu0 %v1632
        %v1984 = vpop.f32.mrf.mxu0
        %v1985 = vadd.f32 %v1647, %v1984
        %1986 = vmatmul.f32.gmra.mxu0 %v1634
        %v1987 = vpop.f32.mrf.mxu0
        %v1988 = vadd.f32 %v1652, %v1987
        %1989 = vmatmul.f32.gmra.mxu0 %v1636
        %v1990 = vpop.f32.mrf.mxu0
        %v1991 = vadd.f32 %v1657, %v1990
        %1992 = vmatmul.f32.gmra.mxu0 %v1638
        %v1993 = vpop.f32.mrf.mxu0
        %v1994 = vadd.f32 %v1662, %v1993
        %1995 = vdwg.mxu0
        %1996 = vmatpush.msra.mxu0 0.0
        %1997 = vmatpush.msra.mxu0 0.0
        %1998 = vmatpush.msra.mxu0 0.0
        %1999 = vmatpush.msra.mxu0 0.0
        %2000 = vmatpush.msra.mxu0 0.0
        %2001 = vmatpush.msra.mxu0 0.0
        %2002 = vmatpush.msra.mxu0 0.0
        %2003 = vmatpush.msra.mxu0 0.0
        %2004 = vmatpush.msra.mxu0 0.0
        %2005 = vmatpush.msra.mxu0 0.0
        %2006 = vmatpush.msra.mxu0 0.0
        %2007 = vmatpush.msra.mxu0 0.0
        %2008 = vmatpush.msra.mxu0 0.0
        %2009 = vmatpush.msra.mxu0 0.0
        %2010 = vmatpush.msra.mxu0 %v1629
        %2011 = vmatpush.msra.mxu0 %v1621
        %2012 = vmatmul.f32.gmra.mxu0 %v1666
        %v2013 = vpop.f32.mrf.mxu0
        %v2014 = vadd.f32 %v1985, %v2013
        %2015 = vmatmul.f32.gmra.mxu0 %v1669
        %v2016 = vpop.f32.mrf.mxu0
        %v2017 = vadd.f32 %v1988, %v2016
        %2018 = vmatmul.f32.gmra.mxu0 %v1672
        %v2019 = vpop.f32.mrf.mxu0
        %v2020 = vadd.f32 %v1991, %v2019
        %2021 = vmatmul.f32.gmra.mxu0 %v1675
        %v2022 = vpop.f32.mrf.mxu0
        %v2023 = vadd.f32 %v1994, %v2022
        %2024 = vdwg.mxu0
        %2025 = vmatpush.msra.mxu0 %v1532
        %2026 = vmatpush.msra.mxu0 %v1525
        %2027 = vmatpush.msra.mxu0 %v1484
        %2028 = vmatpush.msra.mxu0 %v1476
        %2029 = vmatpush.msra.mxu0 %v1403
        %2030 = vmatpush.msra.mxu0 %v1395
        %2031 = vmatpush.msra.mxu0 %v831
        %2032 = vmatpush.msra.mxu0 %v828
        %2033 = vmatpush.msra.mxu0 %v1322
        %2034 = vmatpush.msra.mxu0 %v1314
        %2035 = vmatpush.msra.mxu0 %v1241
        %2036 = vmatpush.msra.mxu0 %v1233
        %2037 = vmatpush.msra.mxu0 %v1134
        %2038 = vmatpush.msra.mxu0 %v1127
        %2039 = vmatpush.msra.mxu0 %v1087
        %2040 = vmatpush.msra.mxu0 %v1079
        %2041 = vmatmul.f32.gmra.mxu0 %v1632
        %v2042 = vpop.f32.mrf.mxu0
        %v2043 = vadd.f32 %v1647, %v2042
        %2044 = vmatmul.f32.gmra.mxu0 %v1634
        %v2045 = vpop.f32.mrf.mxu0
        %v2046 = vadd.f32 %v1652, %v2045
        %2047 = vmatmul.f32.gmra.mxu0 %v1636
        %v2048 = vpop.f32.mrf.mxu0
        %v2049 = vadd.f32 %v1657, %v2048
        %2050 = vmatmul.f32.gmra.mxu0 %v1638
        %v2051 = vpop.f32.mrf.mxu0
        %v2052 = vadd.f32 %v1662, %v2051
        %2053 = vdwg.mxu0
        %2054 = vmatpush.msra.mxu0 0.0
        %2055 = vmatpush.msra.mxu0 0.0
        %2056 = vmatpush.msra.mxu0 0.0
        %2057 = vmatpush.msra.mxu0 0.0
        %2058 = vmatpush.msra.mxu0 0.0
        %2059 = vmatpush.msra.mxu0 0.0
        %2060 = vmatpush.msra.mxu0 0.0
        %2061 = vmatpush.msra.mxu0 0.0
        %2062 = vmatpush.msra.mxu0 0.0
        %2063 = vmatpush.msra.mxu0 0.0
        %2064 = vmatpush.msra.mxu0 0.0
        %2065 = vmatpush.msra.mxu0 0.0
        %2066 = vmatpush.msra.mxu0 0.0
        %2067 = vmatpush.msra.mxu0 0.0
        %2068 = vmatpush.msra.mxu0 %v1630
        %2069 = vmatpush.msra.mxu0 %v1622
        %2070 = vmatmul.f32.gmra.mxu0 %v1666
        %v2071 = vpop.f32.mrf.mxu0
        %v2072 = vadd.f32 %v2043, %v2071
        %2073 = vmatmul.f32.gmra.mxu0 %v1669
        %v2074 = vpop.f32.mrf.mxu0
        %v2075 = vadd.f32 %v2046, %v2074
        %2076 = vmatmul.f32.gmra.mxu0 %v1672
        %v2077 = vpop.f32.mrf.mxu0
        %v2078 = vadd.f32 %v2049, %v2077
        %2079 = vmatmul.f32.gmra.mxu0 %v1675
        %v2080 = vpop.f32.mrf.mxu0
        %v2081 = vadd.f32 %v2052, %v2080
        %2082 = vdwg.mxu0
        %2083 = vmatpush.msra.mxu0 %v1550
        %2084 = vmatpush.msra.mxu0 %v1549
        %2085 = vmatpush.msra.mxu0 %v1485
        %2086 = vmatpush.msra.mxu0 %v1477
        %2087 = vmatpush.msra.mxu0 %v1404
        %2088 = vmatpush.msra.mxu0 %v1396
        %2089 = vmatpush.msra.mxu0 %v877
        %2090 = vmatpush.msra.mxu0 %v874
        %2091 = vmatpush.msra.mxu0 %v1323
        %2092 = vmatpush.msra.mxu0 %v1315
        %2093 = vmatpush.msra.mxu0 %v1242
        %2094 = vmatpush.msra.mxu0 %v1234
        %2095 = vmatpush.msra.mxu0 %v1135
        %2096 = vmatpush.msra.mxu0 %v1128
        %2097 = vmatpush.msra.mxu0 %v1088
        %2098 = vmatpush.msra.mxu0 %v1080
        %2099 = vmatmul.f32.gmra.mxu0 %v1632
        %v2100 = vpop.f32.mrf.mxu0
        %v2101 = vadd.f32 %v1647, %v2100
        %2102 = vmatmul.f32.gmra.mxu0 %v1634
        %v2103 = vpop.f32.mrf.mxu0
        %v2104 = vadd.f32 %v1652, %v2103
        %2105 = vmatmul.f32.gmra.mxu0 %v1636
        %v2106 = vpop.f32.mrf.mxu0
        %v2107 = vadd.f32 %v1657, %v2106
        %2108 = vmatmul.f32.gmra.mxu0 %v1638
        %v2109 = vpop.f32.mrf.mxu0
        %v2110 = vadd.f32 %v1662, %v2109
        %2111 = vdwg.mxu0
        %2112 = vmatpush.msra.mxu0 0.0
        %2113 = vmatpush.msra.mxu0 0.0
        %2114 = vmatpush.msra.mxu0 0.0
        %2115 = vmatpush.msra.mxu0 0.0
        %2116 = vmatpush.msra.mxu0 0.0
        %2117 = vmatpush.msra.mxu0 0.0
        %2118 = vmatpush.msra.mxu0 0.0
        %2119 = vmatpush.msra.mxu0 0.0
        %2120 = vmatpush.msra.mxu0 0.0
        %2121 = vmatpush.msra.mxu0 0.0
        %2122 = vmatpush.msra.mxu0 0.0
        %2123 = vmatpush.msra.mxu0 0.0
        %2124 = vmatpush.msra.mxu0 0.0
        %2125 = vmatpush.msra.mxu0 0.0
        %2126 = vmatpush.msra.mxu0 %v1631
        %2127 = vmatpush.msra.mxu0 %v1623
        %2128 = vmatmul.f32.gmra.mxu0 %v1666
        %v2129 = vpop.f32.mrf.mxu0
        %v2130 = vadd.f32 %v2101, %v2129
        %2131 = vmatmul.f32.gmra.mxu0 %v1669
        %v2132 = vpop.f32.mrf.mxu0
        %v2133 = vadd.f32 %v2104, %v2132
        %2134 = vmatmul.f32.gmra.mxu0 %v1672
        %v2135 = vpop.f32.mrf.mxu0
        %v2136 = vadd.f32 %v2107, %v2135
        %2137 = vmatmul.f32.gmra.mxu0 %v1675
        %v2138 = vpop.f32.mrf.mxu0
        %v2139 = vadd.f32 %v2110, %v2138
        %2140 = vdwg.mxu0
        %2141 = vst [vmem:[%s250] sm:$0xff] %v1724
        %2142 = vst [vmem:[%s250 + $0x8] sm:$0xff] %v1782
        %2143 = vst [vmem:[%s250 + $0x10] sm:$0xff] %v1840
        %2144 = vst [vmem:[%s250 + $0x18] sm:$0xff] %v1898
        %2145 = vst [vmem:[%s250 + $0x20] sm:$0xff] %v1956
        %2146 = vst [vmem:[%s250 + $0x28] sm:$0xff] %v2014
        %2147 = vst [vmem:[%s250 + $0x30] sm:$0xff] %v2072
        %2148 = vst [vmem:[%s250 + $0x38] sm:$0xff] %v2130
        %2149 = vst [vmem:[%s250 + $0x40] sm:$0xff] %v1727
        %2150 = vst [vmem:[%s250 + $0x48] sm:$0xff] %v1785
        %2151 = vst [vmem:[%s250 + $0x50] sm:$0xff] %v1843
        %2152 = vst [vmem:[%s250 + $0x58] sm:$0xff] %v1901
        %2153 = vst [vmem:[%s250 + $0x60] sm:$0xff] %v1959
        %2154 = vst [vmem:[%s250 + $0x68] sm:$0xff] %v2017
        %2155 = vst [vmem:[%s250 + $0x70] sm:$0xff] %v2075
        %2156 = vst [vmem:[%s250 + $0x78] sm:$0xff] %v2133
        %2157 = vst [vmem:[%s250 + $0x80] sm:$0xff] %v1730
        %2158 = vst [vmem:[%s250 + $0x88] sm:$0xff] %v1788
        %2159 = vst [vmem:[%s250 + $0x90] sm:$0xff] %v1846
        %2160 = vst [vmem:[%s250 + $0x98] sm:$0xff] %v1904
        %2161 = vst [vmem:[%s250 + $0xa0] sm:$0xff] %v1962
        %2162 = vst [vmem:[%s250 + $0xa8] sm:$0xff] %v2020
        %2163 = vst [vmem:[%s250 + $0xb0] sm:$0xff] %v2078
        %2164 = vst [vmem:[%s250 + $0xb8] sm:$0xff] %v2136
        %2165 = vst [vmem:[%s250 + $0xc0] sm:$0xff] %v1733
        %2166 = vst [vmem:[%s250 + $0xc8] sm:$0xff] %v1791
        %2167 = vst [vmem:[%s250 + $0xd0] sm:$0xff] %v1849
        %2168 = vst [vmem:[%s250 + $0xd8] sm:$0xff] %v1907
        %2169 = vst [vmem:[%s250 + $0xe0] sm:$0xff] %v1965
        %2170 = vst [vmem:[%s250 + $0xe8] sm:$0xff] %v2023
        %2171 = vst [vmem:[%s250 + $0xf0] sm:$0xff] %v2081
        %2172 = vst [vmem:[%s250 + $0xf8] sm:$0xff] %v2139
        %s2173 = sand.u32 %s119, 1
        %s2174 = scalar_lea.sflag [#allocation4], %s2173
        %s2175 = sand.u32 %s119, 1
        %s2176 = smul.addr %s2175, 256
        %s2177 = scalar_lea.vmem [#allocation8], %s2176
        // Predicated region
        $region49: #{tpu_custom_call.1} parent=35 // pred_check
          %p2178 = pneg %p129
        $region50: #{tpu_custom_call.1} parent=35 // pred_check_branch
          %2180 = sbr.rel (%p2178) target = $region52
        $region51: #{tpu_custom_call.1} parent=35 // pred_region
          %2182 = vsyncadd %s2174, 0
          %s2183 = smul.addr %s22, 32
          %s2184 = smul.addr %s2183, 8
          %s2185 = scalar_lea.hbm %s4, %s2184
          %s2186 = sshll.u32 %s2177, 4
          %s2187 = int_to_ptr.vmem [resolvable:$true] %s2186
          %s2188 = sshll.u32 %s2185, 4
          %s2189 = int_to_ptr.hbm [resolvable:$true] %s2188
          %2194 = dma.vmem_to_hbm [thread:$0]  %s2187, 4096, %s2189, %s2174, 1024, 1024, 64
        $region52: #{tpu_custom_call.1} parent=35 // pred_fallthru
          _
      $region36: #{tpu_custom_call.1} parent=5 // pred_fallthru
        _
      %p2195 = scmp.le.s32.totalorder 2, %s17
      // Predicated region
      $region53: #{tpu_custom_call.1} parent=5 // pred_check
        %p2196 = pneg %p2195
      $region54: #{tpu_custom_call.1} parent=5 // pred_check_branch
        %2198 = sbr.rel (%p2196) target = $region56
      $region55: #{tpu_custom_call.1} parent=5 // pred_region
        %s2199 = ssub.s32 %s17, 2
        // Predicated region
        $region57: #{tpu_custom_call.1} parent=55 // pred_check
          %p2200 = pneg %p135
        $region58: #{tpu_custom_call.1} parent=55 // pred_check_branch
          %2202 = sbr.rel (%p2200) target = $region60
        $region59: #{tpu_custom_call.1} parent=55 // pred_region
          %s2203 = sand.u32 %s120, 1
          %s2204 = scalar_lea.sflag [#allocation4], %s2203
          %s2205 = sand.u32 %s120, 1
          %s2206 = smul.addr %s2205, 256
          %s2207 = scalar_lea.vmem [#allocation8], %s2206
          %2209 = dma.done %s2204, 4096
        $region60: #{tpu_custom_call.1} parent=55 // pred_fallthru
          _
      $region56: #{tpu_custom_call.1} parent=5 // pred_fallthru
        _
    $region6: #{tpu_custom_call.1} parent=1 // loop_footer
      %s21 = sadd.s32 1, %s17
    $region7: #{tpu_custom_call.1} parent=1 // loop_footer_branch
      %16 = sbr.rel target = $region3
    $region8: #{tpu_custom_call.1} parent=1 // loop_exit
      _
    %2210 = vsyncpa [#allocation3], 1
    %s2211 = scalar_lea.sflag [#allocation3], 1
    %2212 = vsyncpa %s2211, 1
    %2213 = vsyncpa [#allocation6], 1
    %2214 = vsyncpa [#allocation4], 1
    %s2215 = scalar_lea.sflag [#allocation4], 1
    %2216 = vsyncpa %s2215, 1

</llo_original>
